<compile_context>
chip_gen: v6e
topology: v6e:2x2x1
jax: 0.10.0
libtpu: 0.0.40
codegen_flags: <defaults>
</compile_context>

<pallas_src>
import jax
import jax.numpy as jnp
from jax.experimental import pallas as pl
from jax.experimental.pallas import tpu as pltpu

LANE = 128


def _rup(n, m):
    return ((n + m - 1) // m) * m


# ------------------------------------------------------------------ kernel -----------------
def _conv3x3_kernel(xm_ref, xh_ref, w_ref, o_ref):
    # xm_ref: (1, TH, W+2, Cin)      bf16  padded-image rows [t*TH, t*TH+TH)
    # xh_ref: (1, 2,  W+2, Cin)      bf16  2-row bottom halo  [t*TH+TH, t*TH+TH+2)
    # w_ref : (9, Cin, Cout_pad)     bf16  3x3 taps, k = dh*3 + dw
    # o_ref : (1, TH, W, Cout_pad)   bf16  lane-dense conv output tile
    TH = o_ref.shape[1]
    W = o_ref.shape[2]
    Cout_pad = o_ref.shape[3]
    Cin = xm_ref.shape[3]

    # Single axis-0 concat builds the (TH+2, W+2, Cin) window for this row tile.
    x_win = jnp.concatenate([xm_ref[0], xh_ref[0]], axis=0)

    # 9 accumulated MXU matmuls (no lane-axis im2col concat), f32 accumulation.
    acc = None
    for dh in range(3):
        for dw in range(3):
            tap = x_win[dh:dh + TH, dw:dw + W, :].reshape(TH * W, Cin)
            part = jnp.dot(tap, w_ref[dh * 3 + dw],
                           preferred_element_type=jnp.float32)
            acc = part if acc is None else acc + part

    # bf16 store: halves HBM writeback vs f32 (accumulation above stays f32).
    o_ref[...] = acc.reshape(1, TH, W, Cout_pad).astype(o_ref.dtype)


# ------------------------------------------------------------------ VMEM / tiling policy ---
def _vmem_policy():
    """Generation-aware (limit, row-tile budget) in bytes."""
    cap = None
    try:
        info = pltpu.get_tpu_info()
        cap = getattr(info, "vmem_capacity_bytes", None)
    except Exception:
        cap = None
    if not cap:
        cap = 64 * 1024 * 1024                      # conservative: v7x per-core VMEM
    limit = max(32 * 1024 * 1024, min(int(0.70 * cap), 96 * 1024 * 1024))
    budget = int(0.55 * limit)
    return int(limit), int(budget)


def _tile_footprint_bytes(th, W, Cin, Cout_pad):
    """Conservative per-grid-step VMEM estimate (double-buffered streams + temporaries)."""
    wp = W + 2
    cin_l = _rup(Cin, LANE)            # lane padding of the channel axis
    wp_s = _rup(wp, 16)                # bf16 sublane padding
    w_s = _rup(W, 16)
    m_s = _rup(th * W, 16)
    b = 0
    b += 2 * th * wp_s * cin_l * 2              # main input rows (bf16, double-buffered)
    b += 2 * 2 * wp_s * cin_l * 2               # 2-row halo (bf16, double-buffered)
    b += 2 * th * w_s * Cout_pad * 2            # bf16 output tile (double-buffered)
    b += 2 * 9 * _rup(Cin, 16) * Cout_pad * 2   # folded weight (counted double-buffered)
    b += (th + 2) * wp_s * cin_l * 2            # in-kernel window (axis-0 concat)
    b += _rup(th * W, 8) * Cout_pad * 4         # f32 accumulator
    b += 2 * m_s * cin_l * 2                    # live tap slices
    b += m_s * Cout_pad * 2                     # bf16 cast before store
    return b


def _largest_fitting_even_th(th_max, W, Cin, Cout_pad, budget):
    start = max(2, th_max - (th_max % 2))
    for cand in range(start, 1, -2):
        if _tile_footprint_bytes(cand, W, Cin, Cout_pad) <= budget:
            return cand
    return 2


# ------------------------------------------------------------------ conv wrapper -----------
def conv3x3_same(x, w_oihw, row_tile=None):
    """3x3 / stride-1 / pad-1 / no-bias conv in NHWC via a Pallas TPU kernel.

    x      : (B, H, W, Cin)
    w_oihw : (Cout, Cin, 3, 3)   torch Conv2d weight layout
    returns: (B, H, W, Cout)     bfloat16 (f32 accumulation, bf16 store)
    """
    B, H, W, Cin = x.shape
    Cout = w_oihw.shape[0]
    Cout_pad = _rup(Cout, LANE)
    Wp = W + 2

    vmem_limit, budget = _vmem_policy()
    if row_tile is not None:
        TH = max(2, int(row_tile) + (int(row_tile) % 2))    # halo spec needs TH even
        TH = min(TH, H + (H % 2))
        if _tile_footprint_bytes(TH, W, Cin, Cout_pad) > budget:
            TH = _largest_fitting_even_th(TH, W, Cin, Cout_pad, budget)
    else:
        TH = _largest_fitting_even_th(H + (H % 2), W, Cin, Cout_pad, budget)
        if B < 2 and TH >= H:        # keep >=2 grid programs (v7x dual-TC / megacore)
            half = (H + 1) // 2
            TH = max(2, min(TH, half + (half % 2)))

    nT = (H + TH - 1) // TH
    H_eff = nT * TH                  # ragged H -> zero bottom-pad ("same" zeros), slice later

    # Weight: OIHW -> HWIO -> (9, Cin, Cout) -> lane-pad Cout -> bf16 (trace time).
    w_hwio = jnp.transpose(w_oihw, (2, 3, 1, 0))             # (3, 3, Cin, Cout)
    w_k = w_hwio.reshape(9, Cin, Cout)
    w_k = jnp.pad(w_k, ((0, 0), (0, 0), (0, Cout_pad - Cout))).astype(jnp.bfloat16)

    # Spatial "same" halo + extra bottom rows up to H_eff + bf16 cast (one XLA pass over x).
    x_pad = jnp.pad(x.astype(jnp.bfloat16),
                    ((0, 0), (1, 1 + (H_eff - H)), (1, 1), (0, 0)))  # (B, H_eff+2, Wp, Cin)

    conv = pl.pallas_call(
        _conv3x3_kernel,
        out_shape=jax.ShapeDtypeStruct((B, H_eff, W, Cout_pad), jnp.bfloat16),
        grid_spec=pltpu.PrefetchScalarGridSpec(
            num_scalar_prefetch=0,
            grid=(B, nT),
            in_specs=[
                # main TH rows of the padded image
                pl.BlockSpec((1, TH, Wp, Cin), lambda b, t: (b, t, 0, 0)),
                # single 2-row bottom halo (block size 2 along H; TH even => aligned)
                pl.BlockSpec((1, 2, Wp, Cin),
                             lambda b, t: (b, (t + 1) * (TH // 2), 0, 0)),
                # folded weight (resident; block index never changes)
                pl.BlockSpec((9, Cin, Cout_pad), lambda b, t: (0, 0, 0)),
            ],
            out_specs=pl.BlockSpec((1, TH, W, Cout_pad), lambda b, t: (b, t, 0, 0)),
        ),
        compiler_params=pltpu.CompilerParams(
            dimension_semantics=("parallel", "parallel"),
            vmem_limit_bytes=int(vmem_limit),
        ),
    )(x_pad, x_pad, w_k)

    # Drop bottom padding rows and lane padding (fuses with the downstream shuffle pass).
    return conv[:, :H, :, :Cout]


# ------------------------------------------------------------------ shuffle / module -------
def _reorder_weight_out_channels_ijc(w_oihw, r=2):
    """Permute torch output-channel order (c*r*r + i*r + j) -> (i*r + j)*C + c."""
    Cout = w_oihw.shape[0]
    C = Cout // (r * r)
    idx = [c * r * r + i * r + j for i in range(r) for j in range(r) for c in range(C)]
    return w_oihw[jnp.asarray(idx, dtype=jnp.int32)]


def _pixel_shuffle_nhwc_ijc(y, r=2):
    """PixelShuffle(r) in NHWC for (i, j, c)-ordered channels (C contiguous in minor dim)."""
    B, H, W, Crr = y.shape
    C = Crr // (r * r)
    y = y.reshape(B, H, W, r, r, C)        # (B, H, W, i, j, c)
    y = y.transpose(0, 1, 3, 2, 4, 5)      # (B, H, i, W, j, c)
    return y.reshape(B, H * r, W * r, C)


def _pixel_shuffle_nhwc_torch(y, r=2):
    """Reference-only PixelShuffle(r) in NHWC with torch channel order (c*r*r + i*r + j)."""
    B, H, W, Crr = y.shape
    C = Crr // (r * r)
    y = y.reshape(B, H, W, C, r, r)        # (B, H, W, c, i, j)
    y = y.transpose(0, 1, 4, 2, 5, 3)      # (B, H, i, W, j, c)
    return y.reshape(B, H * r, W * r, C)


def upsample_forward(x, w_oihw, row_tile=None):
    """Upsample.forward: NHWC in -> conv3x3 (n_feat -> 2*n_feat, no bias) -> PixelShuffle(2)."""
    w_ijc = _reorder_weight_out_channels_ijc(w_oihw, r=2)
    y = conv3x3_same(x, w_ijc, row_tile=row_tile)     # (B, H, W, 2*n_feat) bf16
    out = _pixel_shuffle_nhwc_ijc(y, r=2)             # (B, 2H, 2W, n_feat//2) bf16
    return out.astype(x.dtype)                        # restore caller dtype (fuses with shuffle)


# ------------------------------------------------------------------ test -------------------
if __name__ == "__main__":
    key = jax.random.PRNGKey(0)
    kx, kw = jax.random.split(key)

    B, H, W, n_feat = 2, 16, 16, 4
    x = jax.random.normal(kx, (B, H, W, n_feat), dtype=jnp.float32)
    # torch Conv2d weight layout (Cout, Cin, kh, kw)
    w_oihw = 0.1 * jax.random.normal(kw, (2 * n_feat, n_feat, 3, 3), dtype=jnp.float32)

    out = jax.block_until_ready(upsample_forward(x, w_oihw))                 # auto tile
    out_t8 = jax.block_until_ready(upsample_forward(x, w_oihw, row_tile=8))  # multi-tile halo
    out_t6 = jax.block_until_ready(upsample_forward(x, w_oihw, row_tile=6))  # ragged-H pad path

    # Pure-JAX reference on the same bf16-rounded operands (f32 accumulation),
    # torch-ordered weights + torch-ordered pixel shuffle.
    xr = x.astype(jnp.bfloat16).astype(jnp.float32)
    wr = jnp.transpose(w_oihw, (2, 3, 1, 0)).astype(jnp.bfloat16).astype(jnp.float32)
    ref_conv = jax.lax.conv_general_dilated(
        xr, wr, window_strides=(1, 1), padding="SAME",
        dimension_numbers=("NHWC", "HWIO", "NHWC"))
    ref = _pixel_shuffle_nhwc_torch(ref_conv, r=2)

    assert out.shape == (B, 2 * H, 2 * W, n_feat // 2), out.shape
    for o in (out, out_t8, out_t6):
        assert o.shape == ref.shape, (o.shape, ref.shape)
        assert jnp.allclose(o, ref, atol=2e-2, rtol=2e-2)
    print("KERNEL_OK")
</pallas_src>

<mosaic_0001>
module attributes {stable_mosaic.version = 11 : i64} {
  func.func @_conv3x3_kernel(%arg0: i32, %arg1: i32, %arg2: memref<1x16x18x4xbf16, #tpu.memory_space<vmem>>, %arg3: memref<1x2x18x4xbf16, #tpu.memory_space<vmem>>, %arg4: memref<9x4x128xbf16, #tpu.memory_space<vmem>>, %arg5: memref<1x16x16x128xbf16, #tpu.memory_space<vmem>>) attributes {dimension_semantics = [#tpu.dimension_semantics<parallel>, #tpu.dimension_semantics<parallel>], iteration_bounds = array<i64: 2, 1>, scalar_prefetch = 0 : i64, scratch_operands = 0 : i64, tpu.core_type = #tpu.core_type<tc>, window_params = [{transform_indices = @transform_0, window_bounds = array<i64: 1, 16, 18, 4>}, {transform_indices = @transform_1, window_bounds = array<i64: 1, 2, 18, 4>}, {pipeline_mode = #tpu.pipeline_mode<synchronous>, transform_indices = @transform_2, window_bounds = array<i64: 9, 4, 128>}, {transform_indices = @transform_3, window_bounds = array<i64: 1, 16, 16, 128>}]} {
    %c0 = arith.constant 0 : index
    %c0_0 = arith.constant 0 : index
    %c0_1 = arith.constant 0 : index
    %c0_2 = arith.constant 0 : index
    %0 = vector.load %arg2[%c0, %c0_0, %c0_1, %c0_2] : memref<1x16x18x4xbf16, #tpu.memory_space<vmem>>, vector<1x16x18x4xbf16>
    %1 = vector.shape_cast %0 : vector<1x16x18x4xbf16> to vector<16x18x4xbf16>
    %c0_3 = arith.constant 0 : index
    %c0_4 = arith.constant 0 : index
    %c0_5 = arith.constant 0 : index
    %c0_6 = arith.constant 0 : index
    %2 = vector.load %arg3[%c0_3, %c0_4, %c0_5, %c0_6] : memref<1x2x18x4xbf16, #tpu.memory_space<vmem>>, vector<1x2x18x4xbf16>
    %3 = vector.shape_cast %2 : vector<1x2x18x4xbf16> to vector<2x18x4xbf16>
    %4 = tpu.concatenate %1, %3 in 0 : vector<16x18x4xbf16>, vector<2x18x4xbf16> -> vector<18x18x4xbf16>
    %5 = vector.extract_strided_slice %4 {offsets = [0, 0, 0], sizes = [16, 16, 4], strides = [1, 1, 1]} : vector<18x18x4xbf16> to vector<16x16x4xbf16>
    %6 = vector.shape_cast %5 : vector<16x16x4xbf16> to vector<256x4xbf16>
    %c0_7 = arith.constant 0 : index
    %c0_8 = arith.constant 0 : index
    %c0_9 = arith.constant 0 : index
    %7 = vector.load %arg4[%c0_7, %c0_8, %c0_9] : memref<9x4x128xbf16, #tpu.memory_space<vmem>>, vector<1x4x128xbf16>
    %8 = vector.shape_cast %7 : vector<1x4x128xbf16> to vector<4x128xbf16>
    %cst = arith.constant dense<0.000000e+00> : vector<256x128xf32>
    %9 = tpu.matmul %6, %8, %cst {dimension_numbers = #tpu.dot_dimension_numbers<[1], [0], [0], [1], [0, 0, 1, 1], [], []>} : vector<256x4xbf16>, vector<4x128xbf16>, vector<256x128xf32> -> vector<256x128xf32>
    %10 = vector.extract_strided_slice %4 {offsets = [0, 1, 0], sizes = [16, 16, 4], strides = [1, 1, 1]} : vector<18x18x4xbf16> to vector<16x16x4xbf16>
    %11 = vector.shape_cast %10 : vector<16x16x4xbf16> to vector<256x4xbf16>
    %c1 = arith.constant 1 : index
    %c0_10 = arith.constant 0 : index
    %c0_11 = arith.constant 0 : index
    %12 = vector.load %arg4[%c1, %c0_10, %c0_11] : memref<9x4x128xbf16, #tpu.memory_space<vmem>>, vector<1x4x128xbf16>
    %13 = vector.shape_cast %12 : vector<1x4x128xbf16> to vector<4x128xbf16>
    %cst_12 = arith.constant dense<0.000000e+00> : vector<256x128xf32>
    %14 = tpu.matmul %11, %13, %cst_12 {dimension_numbers = #tpu.dot_dimension_numbers<[1], [0], [0], [1], [0, 0, 1, 1], [], []>} : vector<256x4xbf16>, vector<4x128xbf16>, vector<256x128xf32> -> vector<256x128xf32>
    %15 = arith.addf %9, %14 : vector<256x128xf32>
    %16 = vector.extract_strided_slice %4 {offsets = [0, 2, 0], sizes = [16, 16, 4], strides = [1, 1, 1]} : vector<18x18x4xbf16> to vector<16x16x4xbf16>
    %17 = vector.shape_cast %16 : vector<16x16x4xbf16> to vector<256x4xbf16>
    %c2 = arith.constant 2 : index
    %c0_13 = arith.constant 0 : index
    %c0_14 = arith.constant 0 : index
    %18 = vector.load %arg4[%c2, %c0_13, %c0_14] : memref<9x4x128xbf16, #tpu.memory_space<vmem>>, vector<1x4x128xbf16>
    %19 = vector.shape_cast %18 : vector<1x4x128xbf16> to vector<4x128xbf16>
    %cst_15 = arith.constant dense<0.000000e+00> : vector<256x128xf32>
    %20 = tpu.matmul %17, %19, %cst_15 {dimension_numbers = #tpu.dot_dimension_numbers<[1], [0], [0], [1], [0, 0, 1, 1], [], []>} : vector<256x4xbf16>, vector<4x128xbf16>, vector<256x128xf32> -> vector<256x128xf32>
    %21 = arith.addf %15, %20 : vector<256x128xf32>
    %22 = vector.extract_strided_slice %4 {offsets = [1, 0, 0], sizes = [16, 16, 4], strides = [1, 1, 1]} : vector<18x18x4xbf16> to vector<16x16x4xbf16>
    %23 = vector.shape_cast %22 : vector<16x16x4xbf16> to vector<256x4xbf16>
    %c3 = arith.constant 3 : index
    %c0_16 = arith.constant 0 : index
    %c0_17 = arith.constant 0 : index
    %24 = vector.load %arg4[%c3, %c0_16, %c0_17] : memref<9x4x128xbf16, #tpu.memory_space<vmem>>, vector<1x4x128xbf16>
    %25 = vector.shape_cast %24 : vector<1x4x128xbf16> to vector<4x128xbf16>
    %cst_18 = arith.constant dense<0.000000e+00> : vector<256x128xf32>
    %26 = tpu.matmul %23, %25, %cst_18 {dimension_numbers = #tpu.dot_dimension_numbers<[1], [0], [0], [1], [0, 0, 1, 1], [], []>} : vector<256x4xbf16>, vector<4x128xbf16>, vector<256x128xf32> -> vector<256x128xf32>
    %27 = arith.addf %21, %26 : vector<256x128xf32>
    %28 = vector.extract_strided_slice %4 {offsets = [1, 1, 0], sizes = [16, 16, 4], strides = [1, 1, 1]} : vector<18x18x4xbf16> to vector<16x16x4xbf16>
    %29 = vector.shape_cast %28 : vector<16x16x4xbf16> to vector<256x4xbf16>
    %c4 = arith.constant 4 : index
    %c0_19 = arith.constant 0 : index
    %c0_20 = arith.constant 0 : index
    %30 = vector.load %arg4[%c4, %c0_19, %c0_20] : memref<9x4x128xbf16, #tpu.memory_space<vmem>>, vector<1x4x128xbf16>
    %31 = vector.shape_cast %30 : vector<1x4x128xbf16> to vector<4x128xbf16>
    %cst_21 = arith.constant dense<0.000000e+00> : vector<256x128xf32>
    %32 = tpu.matmul %29, %31, %cst_21 {dimension_numbers = #tpu.dot_dimension_numbers<[1], [0], [0], [1], [0, 0, 1, 1], [], []>} : vector<256x4xbf16>, vector<4x128xbf16>, vector<256x128xf32> -> vector<256x128xf32>
    %33 = arith.addf %27, %32 : vector<256x128xf32>
    %34 = vector.extract_strided_slice %4 {offsets = [1, 2, 0], sizes = [16, 16, 4], strides = [1, 1, 1]} : vector<18x18x4xbf16> to vector<16x16x4xbf16>
    %35 = vector.shape_cast %34 : vector<16x16x4xbf16> to vector<256x4xbf16>
    %c5 = arith.constant 5 : index
    %c0_22 = arith.constant 0 : index
    %c0_23 = arith.constant 0 : index
    %36 = vector.load %arg4[%c5, %c0_22, %c0_23] : memref<9x4x128xbf16, #tpu.memory_space<vmem>>, vector<1x4x128xbf16>
    %37 = vector.shape_cast %36 : vector<1x4x128xbf16> to vector<4x128xbf16>
    %cst_24 = arith.constant dense<0.000000e+00> : vector<256x128xf32>
    %38 = tpu.matmul %35, %37, %cst_24 {dimension_numbers = #tpu.dot_dimension_numbers<[1], [0], [0], [1], [0, 0, 1, 1], [], []>} : vector<256x4xbf16>, vector<4x128xbf16>, vector<256x128xf32> -> vector<256x128xf32>
    %39 = arith.addf %33, %38 : vector<256x128xf32>
    %40 = vector.extract_strided_slice %4 {offsets = [2, 0, 0], sizes = [16, 16, 4], strides = [1, 1, 1]} : vector<18x18x4xbf16> to vector<16x16x4xbf16>
    %41 = vector.shape_cast %40 : vector<16x16x4xbf16> to vector<256x4xbf16>
    %c6 = arith.constant 6 : index
    %c0_25 = arith.constant 0 : index
    %c0_26 = arith.constant 0 : index
    %42 = vector.load %arg4[%c6, %c0_25, %c0_26] : memref<9x4x128xbf16, #tpu.memory_space<vmem>>, vector<1x4x128xbf16>
    %43 = vector.shape_cast %42 : vector<1x4x128xbf16> to vector<4x128xbf16>
    %cst_27 = arith.constant dense<0.000000e+00> : vector<256x128xf32>
    %44 = tpu.matmul %41, %43, %cst_27 {dimension_numbers = #tpu.dot_dimension_numbers<[1], [0], [0], [1], [0, 0, 1, 1], [], []>} : vector<256x4xbf16>, vector<4x128xbf16>, vector<256x128xf32> -> vector<256x128xf32>
    %45 = arith.addf %39, %44 : vector<256x128xf32>
    %46 = vector.extract_strided_slice %4 {offsets = [2, 1, 0], sizes = [16, 16, 4], strides = [1, 1, 1]} : vector<18x18x4xbf16> to vector<16x16x4xbf16>
    %47 = vector.shape_cast %46 : vector<16x16x4xbf16> to vector<256x4xbf16>
    %c7 = arith.constant 7 : index
    %c0_28 = arith.constant 0 : index
    %c0_29 = arith.constant 0 : index
    %48 = vector.load %arg4[%c7, %c0_28, %c0_29] : memref<9x4x128xbf16, #tpu.memory_space<vmem>>, vector<1x4x128xbf16>
    %49 = vector.shape_cast %48 : vector<1x4x128xbf16> to vector<4x128xbf16>
    %cst_30 = arith.constant dense<0.000000e+00> : vector<256x128xf32>
    %50 = tpu.matmul %47, %49, %cst_30 {dimension_numbers = #tpu.dot_dimension_numbers<[1], [0], [0], [1], [0, 0, 1, 1], [], []>} : vector<256x4xbf16>, vector<4x128xbf16>, vector<256x128xf32> -> vector<256x128xf32>
    %51 = arith.addf %45, %50 : vector<256x128xf32>
    %52 = vector.extract_strided_slice %4 {offsets = [2, 2, 0], sizes = [16, 16, 4], strides = [1, 1, 1]} : vector<18x18x4xbf16> to vector<16x16x4xbf16>
    %53 = vector.shape_cast %52 : vector<16x16x4xbf16> to vector<256x4xbf16>
    %c8 = arith.constant 8 : index
    %c0_31 = arith.constant 0 : index
    %c0_32 = arith.constant 0 : index
    %54 = vector.load %arg4[%c8, %c0_31, %c0_32] : memref<9x4x128xbf16, #tpu.memory_space<vmem>>, vector<1x4x128xbf16>
    %55 = vector.shape_cast %54 : vector<1x4x128xbf16> to vector<4x128xbf16>
    %cst_33 = arith.constant dense<0.000000e+00> : vector<256x128xf32>
    %56 = tpu.matmul %53, %55, %cst_33 {dimension_numbers = #tpu.dot_dimension_numbers<[1], [0], [0], [1], [0, 0, 1, 1], [], []>} : vector<256x4xbf16>, vector<4x128xbf16>, vector<256x128xf32> -> vector<256x128xf32>
    %57 = arith.addf %51, %56 : vector<256x128xf32>
    %58 = vector.shape_cast %57 : vector<256x128xf32> to vector<1x16x16x128xf32>
    %59 = arith.truncf %58 : vector<1x16x16x128xf32> to vector<1x16x16x128xbf16>
    %c0_34 = arith.constant 0 : index
    %c0_35 = arith.constant 0 : index
    %c0_36 = arith.constant 0 : index
    %c0_37 = arith.constant 0 : index
    %60 = vector.load %arg5[%c0_34, %c0_35, %c0_36, %c0_37] : memref<1x16x16x128xbf16, #tpu.memory_space<vmem>>, vector<1x16x16x128xbf16>
    tpu.vector_store %arg5[%c0_34, %c0_35, %c0_36, %c0_37], %59 {strides = array<i32>} : memref<1x16x16x128xbf16, #tpu.memory_space<vmem>>, vector<1x16x16x128xbf16>,
    return
  }
  func.func @transform_0(%arg0: i32, %arg1: i32) -> (i32, i32, i32, i32) {
    %c0_i32 = arith.constant 0 : i32
    %c0_i32_0 = arith.constant 0 : i32
    %c0_i32_1 = arith.constant 0 : i32
    return %arg0, %arg1, %c0_i32, %c0_i32_0 : i32, i32, i32, i32
  }
  func.func @transform_1(%arg0: i32, %arg1: i32) -> (i32, i32, i32, i32) {
    %c1_i32 = arith.constant 1 : i32
    %0 = arith.addi %arg1, %c1_i32 : i32
    %c8_i32 = arith.constant 8 : i32
    %1 = arith.muli %0, %c8_i32 : i32
    %c0_i32 = arith.constant 0 : i32
    %c0_i32_0 = arith.constant 0 : i32
    %c0_i32_1 = arith.constant 0 : i32
    return %arg0, %1, %c0_i32, %c0_i32_0 : i32, i32, i32, i32
  }
  func.func @transform_2(%arg0: i32, %arg1: i32) -> (i32, i32, i32) {
    %c0_i32 = arith.constant 0 : i32
    %c0_i32_0 = arith.constant 0 : i32
    %c0_i32_1 = arith.constant 0 : i32
    %c0_i32_2 = arith.constant 0 : i32
    return %c0_i32, %c0_i32_0, %c0_i32_1 : i32, i32, i32
  }
  func.func @transform_3(%arg0: i32, %arg1: i32) -> (i32, i32, i32, i32) {
    %c0_i32 = arith.constant 0 : i32
    %c0_i32_0 = arith.constant 0 : i32
    %c0_i32_1 = arith.constant 0 : i32
    return %arg0, %arg1, %c0_i32, %c0_i32_0 : i32, i32, i32, i32
  }
}

</mosaic_0001>

<llo_original>
// kernel: tpu_custom_call.1
$region0: #{tpu_custom_call.1}
  #allocation0 [shape = 'u32[]', space=smem, size = 0x4, offset = 0x4, fixed_abs, tag = 'smem constant byte address 0x4 - core index']
  #allocation1 [shape = 'u32[144,128]{1,0:T(1,128)}', space=vmem, size = 0x12000, scoped, tag = 'internal scratch']
  %s0 = inlined_call_operand.vmem [shape: bf16[2,18,18,4], index: 0, kind: input, shape index: {}]
  %s1 = inlined_call_operand.vmem [shape: bf16[2,18,18,4], index: 1, kind: input, shape index: {}]
  %s2 = inlined_call_operand.vmem [shape: bf16[9,4,128], index: 2, kind: input, shape index: {}]
  %s3 = inlined_call_operand.hbm [shape: bf16[2,16,16,128], index: 3, kind: output, shape index: {}]
  %s4 = sld [smem:[#allocation0]]
  $region45: #{tpu_custom_call.1} parent=0
    _
  %s6 = ssub.s32 1, %s4
  %s7 = scalar_select 0, %s6, %s4
  $region1: #{tpu_custom_call.1} parent=0
    #allocation2 [shape = 'u8[131072]{0}', space=vmem, size = 0x20000, scoped, tag = 'output window, operand 0']
    #allocation3 [shape = 's32[2]{0}', space=sflag, size = 0x8, scoped, tag = 'scoped memory for tpu_custom_call.1']
    %8 = vsyncpa [#allocation3], 0
    %s9 = scalar_lea.sflag [#allocation3], 1
    %10 = vsyncpa %s9, 0
    loop: start=0, step=1, limit=4
    $region2: #{tpu_custom_call.1} parent=1 // loop_pre_header
      _
    $region3: #{tpu_custom_call.1} parent=1 // loop_header
      %s12 = sphi 0, %s16
      %p13 = scmp.ge.s32.totalorder %s12, 4
      %s19 = sphi 0, %s31
      %s20 = sphi 0, %s27
      %s21 = sphi 0, %s19
      %s22 = sphi 0, %s20
      %s23 = sphi 0, %s21
      %s24 = sphi 0, %s22
      %s36 = sphi 0, %s38
      %s39 = sphi 0, %s36
      %s40 = sphi 0, %s39
      %s56 = sphi 0, %s40
      %s68 = sphi 0, %s70
      %s71 = sphi 0, %s68
      %s72 = sphi 0, %s71
      %s88 = sphi 0, %s72
      %s92 = sphi 0, %s92
      %s94 = sphi 0, %s92
      %s95 = sphi 0, %s94
      %s109 = sphi 0, %s95
      %s117 = sphi 0, %s119
      %s120 = sphi 0, %s117
      %s121 = sphi 0, %s120
      %s137 = sphi 0, %s121
    $region4: #{tpu_custom_call.1} parent=1 // loop_header_branch
      %15 = sbr.rel (%p13) target = $region8
    $region5: #{tpu_custom_call.1} parent=1 // loop_body
      %s17 = ssub.s32 %s12, 1
      %s18 = ssub.s32 %s12, 2
      %s25 = sadd.s32 1, %s20
      %p26 = scmp.ge.s32.totalorder %s25, 1
      %s27 = scalar_select %p26, 0, %s25
      %s28 = sadd.s32 1, %s19
      %s29 = scalar_select %p26, %s28, %s19
      %p30 = scmp.ge.s32.totalorder %s29, 2
      %s31 = scalar_select %p30, 0, %s29
      %s32 = ssub.s32 %s19, %s31
      %s33 = ssub.s32 %s20, %s27
      %s34 = sor.u32 %s32, %s33
      %p35 = scmp.eq.s32.totalorder %s34, 0
      %s37 = sadd.s32 %s36, 1
      %s38 = scalar_select %p35, %s36, %s37
      %p41 = pneg %p35
      %p42 = scmp.eq.s32.totalorder %s12, 1
      %p43 = por %p41, %p42
      %p44 = scmp.ne.s32.totalorder %s36, %s39
      %p45 = scmp.eq.s32.totalorder %s12, 0
      %p46 = por %p44, %p45
      %p47 = scmp.ne.s32.totalorder %s36, %s39
      %p48 = scmp.eq.s32.totalorder %s17, 1
      %p49 = por %p47, %p48
      %p50 = scmp.ne.s32.totalorder %s39, %s40
      %p51 = scmp.eq.s32.totalorder %s17, 0
      %p52 = por %p50, %p51
      %p53 = scmp.ne.s32.totalorder %s39, %s40
      %p54 = scmp.eq.s32.totalorder %s18, 1
      %p55 = por %p53, %p54
      %p57 = scmp.ne.s32.totalorder %s40, %s56
      %p58 = scmp.eq.s32.totalorder %s18, 0
      %p59 = por %p57, %p58
      %s60 = sadd.s32 %s20, 1
      %s61 = smul.u32 %s60, 8
      %s62 = sadd.s32 %s27, 1
      %s63 = smul.u32 %s62, 8
      %s64 = ssub.s32 %s19, %s31
      %s65 = ssub.s32 %s61, %s63
      %s66 = sor.u32 %s64, %s65
      %p67 = scmp.eq.s32.totalorder %s66, 0
      %s69 = sadd.s32 %s68, 1
      %s70 = scalar_select %p67, %s68, %s69
      %p73 = pneg %p67
      %p74 = scmp.eq.s32.totalorder %s12, 1
      %p75 = por %p73, %p74
      %p76 = scmp.ne.s32.totalorder %s68, %s71
      %p77 = scmp.eq.s32.totalorder %s12, 0
      %p78 = por %p76, %p77
      %p79 = scmp.ne.s32.totalorder %s68, %s71
      %p80 = scmp.eq.s32.totalorder %s17, 1
      %p81 = por %p79, %p80
      %p82 = scmp.ne.s32.totalorder %s71, %s72
      %p83 = scmp.eq.s32.totalorder %s17, 0
      %p84 = por %p82, %p83
      %p85 = scmp.ne.s32.totalorder %s71, %s72
      %p86 = scmp.eq.s32.totalorder %s18, 1
      %p87 = por %p85, %p86
      %p89 = scmp.ne.s32.totalorder %s72, %s88
      %p90 = scmp.eq.s32.totalorder %s18, 0
      %p91 = por %p89, %p90
      %s93 = sadd.s32 %s92, 1
      %p96 = scmp.eq.s32.totalorder %s12, 1
      %p97 = scmp.ne.s32.totalorder %s92, %s94
      %p98 = scmp.eq.s32.totalorder %s12, 0
      %p99 = por %p97, %p98
      %p100 = scmp.ne.s32.totalorder %s92, %s94
      %p101 = scmp.eq.s32.totalorder %s17, 1
      %p102 = por %p100, %p101
      %p103 = scmp.ne.s32.totalorder %s94, %s95
      %p104 = scmp.eq.s32.totalorder %s17, 0
      %p105 = por %p103, %p104
      %p106 = scmp.ne.s32.totalorder %s94, %s95
      %p107 = scmp.eq.s32.totalorder %s18, 1
      %p108 = por %p106, %p107
      %p110 = scmp.ne.s32.totalorder %s95, %s109
      %p111 = scmp.eq.s32.totalorder %s18, 0
      %p112 = por %p110, %p111
      %s113 = ssub.s32 %s19, %s31
      %s114 = ssub.s32 %s20, %s27
      %s115 = sor.u32 %s113, %s114
      %p116 = scmp.eq.s32.totalorder %s115, 0
      %s118 = sadd.s32 %s117, 1
      %s119 = scalar_select %p116, %s117, %s118
      %p122 = pneg %p116
      %p123 = scmp.eq.s32.totalorder %s12, 1
      %p124 = por %p122, %p123
      %p125 = scmp.ne.s32.totalorder %s117, %s120
      %p126 = scmp.eq.s32.totalorder %s12, 0
      %p127 = por %p125, %p126
      %p128 = scmp.ne.s32.totalorder %s117, %s120
      %p129 = scmp.eq.s32.totalorder %s17, 1
      %p130 = por %p128, %p129
      %p131 = scmp.ne.s32.totalorder %s120, %s121
      %p132 = scmp.eq.s32.totalorder %s17, 0
      %p133 = por %p131, %p132
      %p134 = scmp.ne.s32.totalorder %s120, %s121
      %p135 = scmp.eq.s32.totalorder %s18, 1
      %p136 = por %p134, %p135
      %p138 = scmp.ne.s32.totalorder %s121, %s137
      %p139 = scmp.eq.s32.totalorder %s18, 0
      %p140 = por %p138, %p139
      %p141 = scmp.le.s32.totalorder 1, %s12
      %p142 = scmp.lt.s32.totalorder %s12, 3
      %p143 = pnand %p141, %p142
      %p144 = pneg %p143
      // Predicated region
      $region9: #{tpu_custom_call.1} parent=5 // pred_check
        _
      $region10: #{tpu_custom_call.1} parent=5 // pred_check_branch
        %146 = sbr.rel (%p143) target = $region12
      $region11: #{tpu_custom_call.1} parent=5 // pred_region
        %s147 = ssub.s32 %s12, 1
        // Predicated region
        $region13: #{tpu_custom_call.1} parent=11 // pred_check
          %p148 = pneg %p105
        $region14: #{tpu_custom_call.1} parent=11 // pred_check_branch
          %150 = sbr.rel (%p148) target = $region16
        $region15: #{tpu_custom_call.1} parent=11 // pred_region
          _
        $region16: #{tpu_custom_call.1} parent=11 // pred_fallthru
          _
      $region12: #{tpu_custom_call.1} parent=5 // pred_fallthru
        _
      %p151 = scmp.lt.s32.totalorder %s12, 2
      // Predicated region
      $region17: #{tpu_custom_call.1} parent=5 // pred_check
        %p152 = pneg %p151
      $region18: #{tpu_custom_call.1} parent=5 // pred_check_branch
        %154 = sbr.rel (%p152) target = $region20
      $region19: #{tpu_custom_call.1} parent=5 // pred_region
        // Predicated region
        $region21: #{tpu_custom_call.1} parent=19 // pred_check
          %p155 = pneg %p46
        $region22: #{tpu_custom_call.1} parent=19 // pred_check_branch
          %157 = sbr.rel (%p155) target = $region24
        $region23: #{tpu_custom_call.1} parent=19 // pred_region
          %s158 = smul.u32 16, %s20
          %s159 = ssub.s32 18, %s158
          %p160 = scmp.lt.s32.totalorder %s159, 16
          %s161 = scalar_select %p160, %s159, 16
          %s162 = smul.u32 64, %s161
          %s163 = smul.u32 %s162, 3
          %p164 = scmp.lt.s32.totalorder %s19, 1
          %s165 = scalar_select %p164, %s19, 1
          %p166 = scmp.lt.s32.totalorder %s158, 17
          %s167 = scalar_select %p166, %s158, 17
          %s168 = smul.addr %s167, 3
          %s169 = smul.addr %s165, 54
          %s170 = sadd.s32 %s168, %s169
          %s171 = smul.addr %s170, 4
          %s172 = scalar_lea.vmem %s0, %s171
          %s173 = smul.u32 16, %s20
          %s174 = ssub.s32 18, %s173
          %p175 = scmp.lt.s32.totalorder %s174, 16
          %s176 = scalar_select %p175, %s174, 16
          %s177 = smul.u32 64, %s176
          %s178 = smul.u32 %s177, 3
        $region24: #{tpu_custom_call.1} parent=19 // pred_fallthru
          _
        // Predicated region
        $region25: #{tpu_custom_call.1} parent=19 // pred_check
          %p179 = pneg %p78
        $region26: #{tpu_custom_call.1} parent=19 // pred_check_branch
          %181 = sbr.rel (%p179) target = $region28
        $region27: #{tpu_custom_call.1} parent=19 // pred_region
          %s182 = sadd.s32 %s20, 1
          %s183 = smul.u32 %s182, 8
          %s184 = smul.u32 2, %s183
          %p185 = scmp.lt.s32.totalorder %s19, 1
          %s186 = scalar_select %p185, %s19, 1
          %p187 = scmp.lt.s32.totalorder %s184, 17
          %s188 = scalar_select %p187, %s184, 17
          %s189 = smul.addr %s188, 3
          %s190 = smul.addr %s186, 54
          %s191 = sadd.s32 %s189, %s190
          %s192 = smul.addr %s191, 4
          %s193 = scalar_lea.vmem %s1, %s192
          %s194 = sadd.s32 %s20, 1
          %s195 = smul.u32 %s194, 8
          %s196 = smul.u32 2, %s195
        $region28: #{tpu_custom_call.1} parent=19 // pred_fallthru
          _
      $region20: #{tpu_custom_call.1} parent=5 // pred_fallthru
        _
      %p197 = scmp.le.s32.totalorder 1, %s12
      %p198 = scmp.lt.s32.totalorder %s12, 3
      %p199 = pnand %p197, %p198
      %p200 = pneg %p199
      // Predicated region
      $region29: #{tpu_custom_call.1} parent=5 // pred_check
        _
      $region30: #{tpu_custom_call.1} parent=5 // pred_check_branch
        %202 = sbr.rel (%p199) target = $region32
      $region31: #{tpu_custom_call.1} parent=5 // pred_region
        %s203 = ssub.s32 %s12, 1
        %s204 = smul.u32 16, %s22
        %s205 = ssub.s32 18, %s204
        %p206 = scmp.lt.s32.totalorder %s205, 16
        %s207 = scalar_select %p206, %s205, 16
        %s208 = smul.u32 64, %s207
        %s209 = smul.u32 %s208, 3
        %p210 = scmp.lt.s32.totalorder %s21, 1
        %s211 = scalar_select %p210, %s21, 1
        %p212 = scmp.lt.s32.totalorder %s204, 17
        %s213 = scalar_select %p212, %s204, 17
        %s214 = smul.addr %s213, 3
        %s215 = smul.addr %s211, 54
        %s216 = sadd.s32 %s214, %s215
        %s217 = smul.addr %s216, 4
        %s218 = scalar_lea.vmem %s0, %s217
        %p219 = pneg %p52
        %p220 = pneg %p49
        %s221 = sadd.s32 %s22, 1
        %s222 = smul.u32 %s221, 8
        %s223 = smul.u32 2, %s222
        %p224 = scmp.lt.s32.totalorder %s21, 1
        %s225 = scalar_select %p224, %s21, 1
        %p226 = scmp.lt.s32.totalorder %s223, 17
        %s227 = scalar_select %p226, %s223, 17
        %s228 = smul.addr %s227, 3
        %s229 = smul.addr %s225, 54
        %s230 = sadd.s32 %s228, %s229
        %s231 = smul.addr %s230, 4
        %s232 = scalar_lea.vmem %s1, %s231
        %p233 = pneg %p84
        %p234 = pneg %p81
        %p235 = pneg %p105
        %p236 = pneg %p102
        %p237 = pneg %p133
        %p238 = pneg %p130
        %s239 = sand.u32 %s120, 1
        %s240 = scalar_lea.sflag [#allocation3], %s239
        %s241 = sand.u32 %s120, 1
        %s242 = smul.addr %s241, 128
        %s243 = scalar_lea.vmem [#allocation2], %s242
        %s244 = smul.u32 16, %s22
        %s245 = ssub.s32 18, %s244
        %p246 = scmp.lt.s32.totalorder %s245, 16
        %s247 = scalar_select %p246, %s245, 16
        %s248 = smul.u32 64, %s247
        %s249 = smul.u32 %s248, 3
        %p250 = scmp.lt.s32.totalorder %s21, 1
        %s251 = scalar_select %p250, %s21, 1
        %p252 = scmp.lt.s32.totalorder %s244, 17
        %s253 = scalar_select %p252, %s244, 17
        %s254 = smul.addr %s253, 3
        %s255 = smul.addr %s251, 54
        %s256 = sadd.s32 %s254, %s255
        %s257 = smul.addr %s256, 4
        %s258 = scalar_lea.vmem %s0, %s257
        %s259 = smul.u32 16, %s22
        %s260 = ssub.s32 18, %s259
        %p261 = scmp.lt.s32.totalorder %s260, 16
        %s262 = scalar_select %p261, %s260, 16
        %s263 = smul.u32 64, %s262
        %s264 = smul.u32 %s263, 3
        %s265 = sadd.s32 %s22, 1
        %s266 = smul.u32 %s265, 8
        %s267 = smul.u32 2, %s266
        %p268 = scmp.lt.s32.totalorder %s21, 1
        %s269 = scalar_select %p268, %s21, 1
        %p270 = scmp.lt.s32.totalorder %s267, 17
        %s271 = scalar_select %p270, %s267, 17
        %s272 = smul.addr %s271, 3
        %s273 = smul.addr %s269, 54
        %s274 = sadd.s32 %s272, %s273
        %s275 = smul.addr %s274, 4
        %s276 = scalar_lea.vmem %s1, %s275
        %s277 = sadd.s32 %s22, 1
        %s278 = smul.u32 %s277, 8
        %s279 = smul.u32 2, %s278
        %s280 = smul.u32 16, %s22
        %v282 = vld [vmem:[%s258] sm:$0xf]
        %v283 = vld [vmem:[%s258 + $0x4] sm:$0xf]
        %v284 = vld [vmem:[%s258 + $0x8] sm:$0x1]
        %v285 = vld [vmem:[%s258 + $0xc] sm:$0xf]
        %v286 = vld [vmem:[%s258 + $0x10] sm:$0xf]
        %v287 = vld [vmem:[%s258 + $0x14] sm:$0x1]
        %v288 = vld [vmem:[%s258 + $0x18] sm:$0xf]
        %v289 = vld [vmem:[%s258 + $0x1c] sm:$0xf]
        %v290 = vld [vmem:[%s258 + $0x20] sm:$0x1]
        %v291 = vld [vmem:[%s258 + $0x24] sm:$0xf]
        %v292 = vld [vmem:[%s258 + $0x28] sm:$0xf]
        %v293 = vld [vmem:[%s258 + $0x2c] sm:$0x1]
        %v294 = vld [vmem:[%s258 + $0x30] sm:$0xf]
        %v295 = vld [vmem:[%s258 + $0x34] sm:$0xf]
        %v296 = vld [vmem:[%s258 + $0x38] sm:$0x1]
        %v297 = vld [vmem:[%s258 + $0x3c] sm:$0xf]
        %v298 = vld [vmem:[%s258 + $0x40] sm:$0xf]
        %v299 = vld [vmem:[%s258 + $0x44] sm:$0x1]
        %v300 = vld [vmem:[%s258 + $0x48] sm:$0xf]
        %v301 = vld [vmem:[%s258 + $0x4c] sm:$0xf]
        %v302 = vld [vmem:[%s258 + $0x50] sm:$0x1]
        %v303 = vld [vmem:[%s258 + $0x54] sm:$0xf]
        %v304 = vld [vmem:[%s258 + $0x58] sm:$0xf]
        %v305 = vld [vmem:[%s258 + $0x5c] sm:$0x1]
        %v306 = vld [vmem:[%s258 + $0x60] sm:$0xf]
        %v307 = vld [vmem:[%s258 + $0x64] sm:$0xf]
        %v308 = vld [vmem:[%s258 + $0x68] sm:$0x1]
        %v309 = vld [vmem:[%s258 + $0x6c] sm:$0xf]
        %v310 = vld [vmem:[%s258 + $0x70] sm:$0xf]
        %v311 = vld [vmem:[%s258 + $0x74] sm:$0x1]
        %v312 = vld [vmem:[%s258 + $0x78] sm:$0xf]
        %v313 = vld [vmem:[%s258 + $0x7c] sm:$0xf]
        %v314 = vld [vmem:[%s258 + $0x80] sm:$0x1]
        %v315 = vld [vmem:[%s258 + $0x84] sm:$0xf]
        %v316 = vld [vmem:[%s258 + $0x88] sm:$0xf]
        %v317 = vld [vmem:[%s258 + $0x8c] sm:$0x1]
        %v318 = vld [vmem:[%s258 + $0x90] sm:$0xf]
        %v319 = vld [vmem:[%s258 + $0x94] sm:$0xf]
        %v320 = vld [vmem:[%s258 + $0x98] sm:$0x1]
        %v321 = vld [vmem:[%s258 + $0x9c] sm:$0xf]
        %v322 = vld [vmem:[%s258 + $0xa0] sm:$0xf]
        %v323 = vld [vmem:[%s258 + $0xa4] sm:$0x1]
        %v324 = vld [vmem:[%s258 + $0xa8] sm:$0xf]
        %v325 = vld [vmem:[%s258 + $0xac] sm:$0xf]
        %v326 = vld [vmem:[%s258 + $0xb0] sm:$0x1]
        %v327 = vld [vmem:[%s258 + $0xb4] sm:$0xf]
        %v328 = vld [vmem:[%s258 + $0xb8] sm:$0xf]
        %v329 = vld [vmem:[%s258 + $0xbc] sm:$0x1]
        %v330 = vld [vmem:[%s276] sm:$0xf]
        %v331 = vld [vmem:[%s276 + $0x4] sm:$0xf]
        %v332 = vld [vmem:[%s276 + $0x8] sm:$0x1]
        %v333 = vld [vmem:[%s276 + $0xc] sm:$0xf]
        %v334 = vld [vmem:[%s276 + $0x10] sm:$0xf]
        %v335 = vld [vmem:[%s276 + $0x14] sm:$0x1]
        %v336 = vld [vmem:[%s2] sm:$0x3]
        %vm337 = vsmask.f32 3328
        %vm338 = vsmask.f32 7440
        %vm339 = vmor %vm337, %vm338
        %v341 = vshrl.u32 %v282, 16
        %v343 = vrot.slane %v341, 4
        %v344 = vshll.u32 %v282, 16
        %v346 = vrot.slane %v344, 5
        %v347 = vor.u32 %v343, %v346
        %v348 = vrot.slane %v347, 4
        %v350 = vshll.u32 %v283, 16
        %v352 = vrot.slane %v350, 5
        %v353 = vsel %vm339, %v348, %v352
        %v354 = vshrl.u32 %v283, 16
        %v356 = vrot.slane %v354, 4
        %v357 = vor.u32 %v356, %v352
        %v358 = vrot.slane %v357, 4
        %v360 = vshll.u32 %v284, 16
        %v362 = vrot.slane %v360, 5
        %v363 = vsel %vm339, %v358, %v362
        %v365 = vshrl.u32 %v285, 16
        %v367 = vrot.slane %v365, 4
        %v368 = vshll.u32 %v285, 16
        %v370 = vrot.slane %v368, 5
        %v371 = vor.u32 %v367, %v370
        %v372 = vrot.slane %v371, 4
        %v374 = vshll.u32 %v286, 16
        %v376 = vrot.slane %v374, 5
        %v377 = vsel %vm339, %v372, %v376
        %v378 = vshrl.u32 %v286, 16
        %v380 = vrot.slane %v378, 4
        %v381 = vor.u32 %v380, %v376
        %v382 = vrot.slane %v381, 4
        %v384 = vshll.u32 %v287, 16
        %v386 = vrot.slane %v384, 5
        %v387 = vsel %vm339, %v382, %v386
        %v389 = vshrl.u32 %v288, 16
        %v391 = vrot.slane %v389, 4
        %v392 = vshll.u32 %v288, 16
        %v394 = vrot.slane %v392, 5
        %v395 = vor.u32 %v391, %v394
        %v396 = vrot.slane %v395, 4
        %v398 = vshll.u32 %v289, 16
        %v400 = vrot.slane %v398, 5
        %v401 = vsel %vm339, %v396, %v400
        %v402 = vshrl.u32 %v289, 16
        %v404 = vrot.slane %v402, 4
        %v405 = vor.u32 %v404, %v400
        %v406 = vrot.slane %v405, 4
        %v408 = vshll.u32 %v290, 16
        %v410 = vrot.slane %v408, 5
        %v411 = vsel %vm339, %v406, %v410
        %v413 = vshrl.u32 %v291, 16
        %v415 = vrot.slane %v413, 4
        %v416 = vshll.u32 %v291, 16
        %v418 = vrot.slane %v416, 5
        %v419 = vor.u32 %v415, %v418
        %v420 = vrot.slane %v419, 4
        %v422 = vshll.u32 %v292, 16
        %v424 = vrot.slane %v422, 5
        %v425 = vsel %vm339, %v420, %v424
        %v426 = vshrl.u32 %v292, 16
        %v428 = vrot.slane %v426, 4
        %v429 = vor.u32 %v428, %v424
        %v430 = vrot.slane %v429, 4
        %v432 = vshll.u32 %v293, 16
        %v434 = vrot.slane %v432, 5
        %v435 = vsel %vm339, %v430, %v434
        %v437 = vshrl.u32 %v294, 16
        %v439 = vrot.slane %v437, 4
        %v440 = vshll.u32 %v294, 16
        %v442 = vrot.slane %v440, 5
        %v443 = vor.u32 %v439, %v442
        %v444 = vrot.slane %v443, 4
        %v446 = vshll.u32 %v295, 16
        %v448 = vrot.slane %v446, 5
        %v449 = vsel %vm339, %v444, %v448
        %v450 = vshrl.u32 %v295, 16
        %v452 = vrot.slane %v450, 4
        %v453 = vor.u32 %v452, %v448
        %v454 = vrot.slane %v453, 4
        %v456 = vshll.u32 %v296, 16
        %v458 = vrot.slane %v456, 5
        %v459 = vsel %vm339, %v454, %v458
        %v461 = vshrl.u32 %v297, 16
        %v463 = vrot.slane %v461, 4
        %v464 = vshll.u32 %v297, 16
        %v466 = vrot.slane %v464, 5
        %v467 = vor.u32 %v463, %v466
        %v468 = vrot.slane %v467, 4
        %v470 = vshll.u32 %v298, 16
        %v472 = vrot.slane %v470, 5
        %v473 = vsel %vm339, %v468, %v472
        %v474 = vshrl.u32 %v298, 16
        %v476 = vrot.slane %v474, 4
        %v477 = vor.u32 %v476, %v472
        %v478 = vrot.slane %v477, 4
        %v480 = vshll.u32 %v299, 16
        %v482 = vrot.slane %v480, 5
        %v483 = vsel %vm339, %v478, %v482
        %v485 = vshrl.u32 %v300, 16
        %v487 = vrot.slane %v485, 4
        %v488 = vshll.u32 %v300, 16
        %v490 = vrot.slane %v488, 5
        %v491 = vor.u32 %v487, %v490
        %v492 = vrot.slane %v491, 4
        %v494 = vshll.u32 %v301, 16
        %v496 = vrot.slane %v494, 5
        %v497 = vsel %vm339, %v492, %v496
        %v498 = vshrl.u32 %v301, 16
        %v500 = vrot.slane %v498, 4
        %v501 = vor.u32 %v500, %v496
        %v502 = vrot.slane %v501, 4
        %v504 = vshll.u32 %v302, 16
        %v506 = vrot.slane %v504, 5
        %v507 = vsel %vm339, %v502, %v506
        %v509 = vshrl.u32 %v303, 16
        %v511 = vrot.slane %v509, 4
        %v512 = vshll.u32 %v303, 16
        %v514 = vrot.slane %v512, 5
        %v515 = vor.u32 %v511, %v514
        %v516 = vrot.slane %v515, 4
        %v518 = vshll.u32 %v304, 16
        %v520 = vrot.slane %v518, 5
        %v521 = vsel %vm339, %v516, %v520
        %v522 = vshrl.u32 %v304, 16
        %v524 = vrot.slane %v522, 4
        %v525 = vor.u32 %v524, %v520
        %v526 = vrot.slane %v525, 4
        %v528 = vshll.u32 %v305, 16
        %v530 = vrot.slane %v528, 5
        %v531 = vsel %vm339, %v526, %v530
        %v533 = vshrl.u32 %v306, 16
        %v535 = vrot.slane %v533, 4
        %v536 = vshll.u32 %v306, 16
        %v538 = vrot.slane %v536, 5
        %v539 = vor.u32 %v535, %v538
        %v540 = vrot.slane %v539, 4
        %v542 = vshll.u32 %v307, 16
        %v544 = vrot.slane %v542, 5
        %v545 = vsel %vm339, %v540, %v544
        %v546 = vshrl.u32 %v307, 16
        %v548 = vrot.slane %v546, 4
        %v549 = vor.u32 %v548, %v544
        %v550 = vrot.slane %v549, 4
        %v552 = vshll.u32 %v308, 16
        %v554 = vrot.slane %v552, 5
        %v555 = vsel %vm339, %v550, %v554
        %v557 = vshrl.u32 %v309, 16
        %v559 = vrot.slane %v557, 4
        %v560 = vshll.u32 %v309, 16
        %v562 = vrot.slane %v560, 5
        %v563 = vor.u32 %v559, %v562
        %v564 = vrot.slane %v563, 4
        %v566 = vshll.u32 %v310, 16
        %v568 = vrot.slane %v566, 5
        %v569 = vsel %vm339, %v564, %v568
        %v570 = vshrl.u32 %v310, 16
        %v572 = vrot.slane %v570, 4
        %v573 = vor.u32 %v572, %v568
        %v574 = vrot.slane %v573, 4
        %v576 = vshll.u32 %v311, 16
        %v578 = vrot.slane %v576, 5
        %v579 = vsel %vm339, %v574, %v578
        %v581 = vshrl.u32 %v312, 16
        %v583 = vrot.slane %v581, 4
        %v584 = vshll.u32 %v312, 16
        %v586 = vrot.slane %v584, 5
        %v587 = vor.u32 %v583, %v586
        %v588 = vrot.slane %v587, 4
        %v590 = vshll.u32 %v313, 16
        %v592 = vrot.slane %v590, 5
        %v593 = vsel %vm339, %v588, %v592
        %v594 = vshrl.u32 %v313, 16
        %v596 = vrot.slane %v594, 4
        %v597 = vor.u32 %v596, %v592
        %v598 = vrot.slane %v597, 4
        %v600 = vshll.u32 %v314, 16
        %v602 = vrot.slane %v600, 5
        %v603 = vsel %vm339, %v598, %v602
        %v605 = vshrl.u32 %v315, 16
        %v607 = vrot.slane %v605, 4
        %v608 = vshll.u32 %v315, 16
        %v610 = vrot.slane %v608, 5
        %v611 = vor.u32 %v607, %v610
        %v612 = vrot.slane %v611, 4
        %v614 = vshll.u32 %v316, 16
        %v616 = vrot.slane %v614, 5
        %v617 = vsel %vm339, %v612, %v616
        %v618 = vshrl.u32 %v316, 16
        %v620 = vrot.slane %v618, 4
        %v621 = vor.u32 %v620, %v616
        %v622 = vrot.slane %v621, 4
        %v624 = vshll.u32 %v317, 16
        %v626 = vrot.slane %v624, 5
        %v627 = vsel %vm339, %v622, %v626
        %v629 = vshrl.u32 %v318, 16
        %v631 = vrot.slane %v629, 4
        %v632 = vshll.u32 %v318, 16
        %v634 = vrot.slane %v632, 5
        %v635 = vor.u32 %v631, %v634
        %v636 = vrot.slane %v635, 4
        %v638 = vshll.u32 %v319, 16
        %v640 = vrot.slane %v638, 5
        %v641 = vsel %vm339, %v636, %v640
        %v642 = vshrl.u32 %v319, 16
        %v644 = vrot.slane %v642, 4
        %v645 = vor.u32 %v644, %v640
        %v646 = vrot.slane %v645, 4
        %v648 = vshll.u32 %v320, 16
        %v650 = vrot.slane %v648, 5
        %v651 = vsel %vm339, %v646, %v650
        %v653 = vshrl.u32 %v321, 16
        %v655 = vrot.slane %v653, 4
        %v656 = vshll.u32 %v321, 16
        %v658 = vrot.slane %v656, 5
        %v659 = vor.u32 %v655, %v658
        %v660 = vrot.slane %v659, 4
        %v662 = vshll.u32 %v322, 16
        %v664 = vrot.slane %v662, 5
        %v665 = vsel %vm339, %v660, %v664
        %v666 = vshrl.u32 %v322, 16
        %v668 = vrot.slane %v666, 4
        %v669 = vor.u32 %v668, %v664
        %v670 = vrot.slane %v669, 4
        %v672 = vshll.u32 %v323, 16
        %v674 = vrot.slane %v672, 5
        %v675 = vsel %vm339, %v670, %v674
        %v677 = vshrl.u32 %v324, 16
        %v679 = vrot.slane %v677, 4
        %v680 = vshll.u32 %v324, 16
        %v682 = vrot.slane %v680, 5
        %v683 = vor.u32 %v679, %v682
        %v684 = vrot.slane %v683, 4
        %v686 = vshll.u32 %v325, 16
        %v688 = vrot.slane %v686, 5
        %v689 = vsel %vm339, %v684, %v688
        %v690 = vshrl.u32 %v325, 16
        %v692 = vrot.slane %v690, 4
        %v693 = vor.u32 %v692, %v688
        %v694 = vrot.slane %v693, 4
        %v696 = vshll.u32 %v326, 16
        %v698 = vrot.slane %v696, 5
        %v699 = vsel %vm339, %v694, %v698
        %v701 = vshrl.u32 %v327, 16
        %v703 = vrot.slane %v701, 4
        %v704 = vshll.u32 %v327, 16
        %v706 = vrot.slane %v704, 5
        %v707 = vor.u32 %v703, %v706
        %v708 = vrot.slane %v707, 4
        %v710 = vshll.u32 %v328, 16
        %v712 = vrot.slane %v710, 5
        %v713 = vsel %vm339, %v708, %v712
        %v714 = vshrl.u32 %v328, 16
        %v716 = vrot.slane %v714, 4
        %v717 = vor.u32 %v716, %v712
        %v718 = vrot.slane %v717, 4
        %v720 = vshll.u32 %v329, 16
        %v722 = vrot.slane %v720, 5
        %v723 = vsel %vm339, %v718, %v722
        %s724 = scalar_lea.vmem %s2, 2
        %v725 = vld [vmem:[%s724] sm:$0x3]
        %v726 = vunpack.c.l.b16 %v353
        %v727 = vunpack.c.l.b16 %v363
        %v728 = vunpack.c.l.b16 %v377
        %v729 = vunpack.c.l.b16 %v387
        %v730 = vunpack.c.l.b16 %v401
        %v731 = vunpack.c.l.b16 %v411
        %v732 = vunpack.c.l.b16 %v425
        %v733 = vunpack.c.l.b16 %v435
        %v734 = vunpack.c.l.b16 %v449
        %v735 = vunpack.c.l.b16 %v459
        %v736 = vunpack.c.l.b16 %v473
        %v737 = vunpack.c.l.b16 %v483
        %v738 = vunpack.c.l.b16 %v497
        %v739 = vunpack.c.l.b16 %v507
        %v740 = vunpack.c.l.b16 %v521
        %v741 = vunpack.c.l.b16 %v531
        %v742 = vunpack.c.l.b16 %v545
        %v743 = vunpack.c.l.b16 %v555
        %v744 = vunpack.c.l.b16 %v569
        %v745 = vunpack.c.l.b16 %v579
        %v746 = vunpack.c.l.b16 %v593
        %v747 = vunpack.c.l.b16 %v603
        %v748 = vunpack.c.l.b16 %v617
        %v749 = vunpack.c.l.b16 %v627
        %v750 = vunpack.c.l.b16 %v641
        %v751 = vunpack.c.l.b16 %v651
        %v752 = vunpack.c.l.b16 %v665
        %v753 = vunpack.c.l.b16 %v675
        %v754 = vunpack.c.l.b16 %v689
        %v755 = vunpack.c.l.b16 %v699
        %v756 = vunpack.c.l.b16 %v713
        %v757 = vunpack.c.l.b16 %v723
        %v758 = vpack.c.b16 %v727, %v726
        %v759 = vpack.c.b16 %v729, %v728
        %v760 = vpack.c.b16 %v731, %v730
        %v761 = vpack.c.b16 %v733, %v732
        %v762 = vpack.c.b16 %v735, %v734
        %v763 = vpack.c.b16 %v737, %v736
        %v764 = vpack.c.b16 %v739, %v738
        %v765 = vpack.c.b16 %v741, %v740
        %v766 = vpack.c.b16 %v743, %v742
        %v767 = vpack.c.b16 %v745, %v744
        %v768 = vpack.c.b16 %v747, %v746
        %v769 = vpack.c.b16 %v749, %v748
        %v770 = vpack.c.b16 %v751, %v750
        %v771 = vpack.c.b16 %v753, %v752
        %v772 = vpack.c.b16 %v755, %v754
        %v773 = vpack.c.b16 %v757, %v756
        %vm774 = vcmask 31744
        %v776 = vsel %vm774, %v758, 0
        %v779 = vsel %vm774, %v759, 0
        %v782 = vsel %vm774, %v760, 0
        %v785 = vsel %vm774, %v761, 0
        %v788 = vsel %vm774, %v762, 0
        %v791 = vsel %vm774, %v763, 0
        %v794 = vsel %vm774, %v764, 0
        %v797 = vsel %vm774, %v765, 0
        %v800 = vsel %vm774, %v766, 0
        %v803 = vsel %vm774, %v767, 0
        %v806 = vsel %vm774, %v768, 0
        %v809 = vsel %vm774, %v769, 0
        %v812 = vsel %vm774, %v770, 0
        %v815 = vsel %vm774, %v771, 0
        %v818 = vsel %vm774, %v772, 0
        %v821 = vsel %vm774, %v773, 0
        %vm823 = vcmask 1041408
        %v825 = vsel %vm823, %v725, 0
        %827 = vmatprep.subr.bf16.mxu0 0
        %828 = vmatpush1.bf16.msra.mxu0 0
        %829 = vmatprep.subr.bf16.mxu0 0
        %830 = vmatpush1.bf16.msra.mxu0 0
        %831 = vmatprep.subr.bf16.mxu0 0
        %832 = vmatpush1.bf16.msra.mxu0 0
        %833 = vmatprep.subr.bf16.mxu0 0
        %834 = vmatpush1.bf16.msra.mxu0 0
        %835 = vmatprep.subr.bf16.mxu0 0
        %836 = vmatpush1.bf16.msra.mxu0 0
        %837 = vmatprep.subr.bf16.mxu0 0
        %838 = vmatpush1.bf16.msra.mxu0 0
        %839 = vmatprep.subr.bf16.mxu0 0
        %840 = vmatpush1.bf16.msra.mxu0 0
        %841 = vmatprep.subr.bf16.mxu0 0
        %842 = vmatpush1.bf16.msra.mxu0 %v825
        %843 = vmatprep.subr.bf16.mxu0 0
        %844 = vmatpush2.bf16.msra.mxu0 0
        %845 = vmatprep.subr.bf16.mxu0 0
        %846 = vmatpush2.bf16.msra.mxu0 0
        %847 = vmatprep.subr.bf16.mxu0 0
        %848 = vmatpush2.bf16.msra.mxu0 0
        %849 = vmatprep.subr.bf16.mxu0 0
        %850 = vmatpush2.bf16.msra.mxu0 0
        %851 = vmatprep.subr.bf16.mxu0 0
        %852 = vmatpush2.bf16.msra.mxu0 0
        %853 = vmatprep.subr.bf16.mxu0 0
        %854 = vmatpush2.bf16.msra.mxu0 0
        %855 = vmatprep.subr.bf16.mxu0 0
        %856 = vmatpush2.bf16.msra.mxu0 0
        %857 = vmatprep.subr.bf16.mxu0 0
        %858 = vmatpush2.bf16.msra.mxu0 0
        %859 = vmatprep.mubr.bf16.mxu0 0
        %860 = vmatmul.mubr.bf16.gmra.mxu0 %v776
        %v861 = vpop.f32.mrf.mxu0
        %v862 = vadd.f32 0.0, %v861
        %v863 = vpop.f32.mrf.mxu0
        %v864 = vpop.f32.mrf.mxu0
        %v865 = vadd.f32 0.0, %v864
        %v866 = vpop.f32.mrf.mxu0
        %867 = vmatprep.mubr.bf16.mxu0 0
        %868 = vmatmul.mubr.bf16.gmra.mxu0 %v779
        %v869 = vpop.f32.mrf.mxu0
        %v870 = vadd.f32 0.0, %v869
        %v871 = vpop.f32.mrf.mxu0
        %v872 = vpop.f32.mrf.mxu0
        %v873 = vadd.f32 0.0, %v872
        %v874 = vpop.f32.mrf.mxu0
        %875 = vmatprep.mubr.bf16.mxu0 0
        %876 = vmatmul.mubr.bf16.gmra.mxu0 %v782
        %v877 = vpop.f32.mrf.mxu0
        %v878 = vadd.f32 0.0, %v877
        %v879 = vpop.f32.mrf.mxu0
        %v880 = vpop.f32.mrf.mxu0
        %v881 = vadd.f32 0.0, %v880
        %v882 = vpop.f32.mrf.mxu0
        %883 = vmatprep.mubr.bf16.mxu0 0
        %884 = vmatmul.mubr.bf16.gmra.mxu0 %v785
        %v885 = vpop.f32.mrf.mxu0
        %v886 = vadd.f32 0.0, %v885
        %v887 = vpop.f32.mrf.mxu0
        %v888 = vpop.f32.mrf.mxu0
        %v889 = vadd.f32 0.0, %v888
        %v890 = vpop.f32.mrf.mxu0
        %891 = vmatprep.mubr.bf16.mxu0 0
        %892 = vmatmul.mubr.bf16.gmra.mxu0 %v788
        %v893 = vpop.f32.mrf.mxu0
        %v894 = vadd.f32 0.0, %v893
        %v895 = vpop.f32.mrf.mxu0
        %v896 = vpop.f32.mrf.mxu0
        %v897 = vadd.f32 0.0, %v896
        %v898 = vpop.f32.mrf.mxu0
        %899 = vmatprep.mubr.bf16.mxu0 0
        %900 = vmatmul.mubr.bf16.gmra.mxu0 %v791
        %v901 = vpop.f32.mrf.mxu0
        %v902 = vadd.f32 0.0, %v901
        %v903 = vpop.f32.mrf.mxu0
        %v904 = vpop.f32.mrf.mxu0
        %v905 = vadd.f32 0.0, %v904
        %v906 = vpop.f32.mrf.mxu0
        %907 = vmatprep.mubr.bf16.mxu0 0
        %908 = vmatmul.mubr.bf16.gmra.mxu0 %v794
        %v909 = vpop.f32.mrf.mxu0
        %v910 = vadd.f32 0.0, %v909
        %v911 = vpop.f32.mrf.mxu0
        %v912 = vpop.f32.mrf.mxu0
        %v913 = vadd.f32 0.0, %v912
        %v914 = vpop.f32.mrf.mxu0
        %915 = vmatprep.mubr.bf16.mxu0 0
        %916 = vmatmul.mubr.bf16.gmra.mxu0 %v797
        %v917 = vpop.f32.mrf.mxu0
        %v918 = vadd.f32 0.0, %v917
        %v919 = vpop.f32.mrf.mxu0
        %v920 = vpop.f32.mrf.mxu0
        %v921 = vadd.f32 0.0, %v920
        %v922 = vpop.f32.mrf.mxu0
        %923 = vmatprep.mubr.bf16.mxu0 0
        %924 = vmatmul.mubr.bf16.gmra.mxu0 %v800
        %v925 = vpop.f32.mrf.mxu0
        %v926 = vadd.f32 0.0, %v925
        %v927 = vpop.f32.mrf.mxu0
        %v928 = vpop.f32.mrf.mxu0
        %v929 = vadd.f32 0.0, %v928
        %v930 = vpop.f32.mrf.mxu0
        %931 = vmatprep.mubr.bf16.mxu0 0
        %932 = vmatmul.mubr.bf16.gmra.mxu0 %v803
        %v933 = vpop.f32.mrf.mxu0
        %v934 = vadd.f32 0.0, %v933
        %v935 = vpop.f32.mrf.mxu0
        %v936 = vpop.f32.mrf.mxu0
        %v937 = vadd.f32 0.0, %v936
        %v938 = vpop.f32.mrf.mxu0
        %939 = vmatprep.mubr.bf16.mxu0 0
        %940 = vmatmul.mubr.bf16.gmra.mxu0 %v806
        %v941 = vpop.f32.mrf.mxu0
        %v942 = vadd.f32 0.0, %v941
        %v943 = vpop.f32.mrf.mxu0
        %v944 = vpop.f32.mrf.mxu0
        %v945 = vadd.f32 0.0, %v944
        %v946 = vpop.f32.mrf.mxu0
        %947 = vmatprep.mubr.bf16.mxu0 0
        %948 = vmatmul.mubr.bf16.gmra.mxu0 %v809
        %v949 = vpop.f32.mrf.mxu0
        %v950 = vadd.f32 0.0, %v949
        %v951 = vpop.f32.mrf.mxu0
        %v952 = vpop.f32.mrf.mxu0
        %v953 = vadd.f32 0.0, %v952
        %v954 = vpop.f32.mrf.mxu0
        %955 = vmatprep.mubr.bf16.mxu0 0
        %956 = vmatmul.mubr.bf16.gmra.mxu0 %v812
        %v957 = vpop.f32.mrf.mxu0
        %v958 = vadd.f32 0.0, %v957
        %v959 = vpop.f32.mrf.mxu0
        %v960 = vpop.f32.mrf.mxu0
        %v961 = vadd.f32 0.0, %v960
        %v962 = vpop.f32.mrf.mxu0
        %963 = vmatprep.mubr.bf16.mxu0 0
        %964 = vmatmul.mubr.bf16.gmra.mxu0 %v815
        %v965 = vpop.f32.mrf.mxu0
        %v966 = vadd.f32 0.0, %v965
        %v967 = vpop.f32.mrf.mxu0
        %v968 = vpop.f32.mrf.mxu0
        %v969 = vadd.f32 0.0, %v968
        %v970 = vpop.f32.mrf.mxu0
        %971 = vmatprep.mubr.bf16.mxu0 0
        %972 = vmatmul.mubr.bf16.gmra.mxu0 %v818
        %v973 = vpop.f32.mrf.mxu0
        %v974 = vadd.f32 0.0, %v973
        %v975 = vpop.f32.mrf.mxu0
        %v976 = vpop.f32.mrf.mxu0
        %v977 = vadd.f32 0.0, %v976
        %v978 = vpop.f32.mrf.mxu0
        %979 = vmatprep.mubr.bf16.mxu0 0
        %980 = vmatmul.mubr.bf16.gmra.mxu0 %v821
        %v981 = vpop.f32.mrf.mxu0
        %v982 = vadd.f32 0.0, %v981
        %v983 = vpop.f32.mrf.mxu0
        %v984 = vpop.f32.mrf.mxu0
        %v985 = vadd.f32 0.0, %v984
        %v986 = vpop.f32.mrf.mxu0
        %987 = vdwg.mxu0
        %v1020 = vunpack.c.l.b16 %v282
        %v1021 = vunpack.c.l.b16 %v283
        %v1022 = vunpack.c.l.b16 %v285
        %v1023 = vunpack.c.l.b16 %v286
        %v1024 = vunpack.c.l.b16 %v288
        %v1025 = vunpack.c.l.b16 %v289
        %v1026 = vunpack.c.l.b16 %v291
        %v1027 = vunpack.c.l.b16 %v292
        %v1028 = vunpack.c.l.b16 %v294
        %v1029 = vunpack.c.l.b16 %v295
        %v1030 = vunpack.c.l.b16 %v297
        %v1031 = vunpack.c.l.b16 %v298
        %v1032 = vunpack.c.l.b16 %v300
        %v1033 = vunpack.c.l.b16 %v301
        %v1034 = vunpack.c.l.b16 %v303
        %v1035 = vunpack.c.l.b16 %v304
        %v1036 = vunpack.c.l.b16 %v306
        %v1037 = vunpack.c.l.b16 %v307
        %v1038 = vunpack.c.l.b16 %v309
        %v1039 = vunpack.c.l.b16 %v310
        %v1040 = vunpack.c.l.b16 %v312
        %v1041 = vunpack.c.l.b16 %v313
        %v1042 = vunpack.c.l.b16 %v315
        %v1043 = vunpack.c.l.b16 %v316
        %v1044 = vunpack.c.l.b16 %v318
        %v1045 = vunpack.c.l.b16 %v319
        %v1046 = vunpack.c.l.b16 %v321
        %v1047 = vunpack.c.l.b16 %v322
        %v1048 = vunpack.c.l.b16 %v324
        %v1049 = vunpack.c.l.b16 %v325
        %v1050 = vunpack.c.l.b16 %v327
        %v1051 = vunpack.c.l.b16 %v328
        %v1052 = vpack.c.b16 %v1021, %v1020
        %v1053 = vpack.c.b16 %v1023, %v1022
        %v1054 = vpack.c.b16 %v1025, %v1024
        %v1055 = vpack.c.b16 %v1027, %v1026
        %v1056 = vpack.c.b16 %v1029, %v1028
        %v1057 = vpack.c.b16 %v1031, %v1030
        %v1058 = vpack.c.b16 %v1033, %v1032
        %v1059 = vpack.c.b16 %v1035, %v1034
        %v1060 = vpack.c.b16 %v1037, %v1036
        %v1061 = vpack.c.b16 %v1039, %v1038
        %v1062 = vpack.c.b16 %v1041, %v1040
        %v1063 = vpack.c.b16 %v1043, %v1042
        %v1064 = vpack.c.b16 %v1045, %v1044
        %v1065 = vpack.c.b16 %v1047, %v1046
        %v1066 = vpack.c.b16 %v1049, %v1048
        %v1067 = vpack.c.b16 %v1051, %v1050
        %v1069 = vsel %vm774, %v1052, 0
        %v1072 = vsel %vm774, %v1053, 0
        %v1075 = vsel %vm774, %v1054, 0
        %v1078 = vsel %vm774, %v1055, 0
        %v1081 = vsel %vm774, %v1056, 0
        %v1084 = vsel %vm774, %v1057, 0
        %v1087 = vsel %vm774, %v1058, 0
        %v1090 = vsel %vm774, %v1059, 0
        %v1093 = vsel %vm774, %v1060, 0
        %v1096 = vsel %vm774, %v1061, 0
        %v1099 = vsel %vm774, %v1062, 0
        %v1102 = vsel %vm774, %v1063, 0
        %v1105 = vsel %vm774, %v1064, 0
        %v1108 = vsel %vm774, %v1065, 0
        %v1111 = vsel %vm774, %v1066, 0
        %v1114 = vsel %vm774, %v1067, 0
        %v1117 = vsel %vm823, %v336, 0
        %1119 = vmatprep.subr.bf16.mxu0 0
        %1120 = vmatpush1.bf16.msra.mxu0 0
        %1121 = vmatprep.subr.bf16.mxu0 0
        %1122 = vmatpush1.bf16.msra.mxu0 0
        %1123 = vmatprep.subr.bf16.mxu0 0
        %1124 = vmatpush1.bf16.msra.mxu0 0
        %1125 = vmatprep.subr.bf16.mxu0 0
        %1126 = vmatpush1.bf16.msra.mxu0 0
        %1127 = vmatprep.subr.bf16.mxu0 0
        %1128 = vmatpush1.bf16.msra.mxu0 0
        %1129 = vmatprep.subr.bf16.mxu0 0
        %1130 = vmatpush1.bf16.msra.mxu0 0
        %1131 = vmatprep.subr.bf16.mxu0 0
        %1132 = vmatpush1.bf16.msra.mxu0 0
        %1133 = vmatprep.subr.bf16.mxu0 0
        %1134 = vmatpush1.bf16.msra.mxu0 %v1117
        %1135 = vmatprep.subr.bf16.mxu0 0
        %1136 = vmatpush2.bf16.msra.mxu0 0
        %1137 = vmatprep.subr.bf16.mxu0 0
        %1138 = vmatpush2.bf16.msra.mxu0 0
        %1139 = vmatprep.subr.bf16.mxu0 0
        %1140 = vmatpush2.bf16.msra.mxu0 0
        %1141 = vmatprep.subr.bf16.mxu0 0
        %1142 = vmatpush2.bf16.msra.mxu0 0
        %1143 = vmatprep.subr.bf16.mxu0 0
        %1144 = vmatpush2.bf16.msra.mxu0 0
        %1145 = vmatprep.subr.bf16.mxu0 0
        %1146 = vmatpush2.bf16.msra.mxu0 0
        %1147 = vmatprep.subr.bf16.mxu0 0
        %1148 = vmatpush2.bf16.msra.mxu0 0
        %1149 = vmatprep.subr.bf16.mxu0 0
        %1150 = vmatpush2.bf16.msra.mxu0 0
        %1151 = vmatprep.mubr.bf16.mxu0 0
        %1152 = vmatmul.mubr.bf16.gmra.mxu0 %v1069
        %v1153 = vpop.f32.mrf.mxu0
        %v1154 = vadd.f32 %v862, %v1153
        %v1155 = vpop.f32.mrf.mxu0
        %v1156 = vpop.f32.mrf.mxu0
        %v1157 = vadd.f32 %v865, %v1156
        %v1158 = vpop.f32.mrf.mxu0
        %1159 = vmatprep.mubr.bf16.mxu0 0
        %1160 = vmatmul.mubr.bf16.gmra.mxu0 %v1072
        %v1161 = vpop.f32.mrf.mxu0
        %v1162 = vadd.f32 %v870, %v1161
        %v1163 = vpop.f32.mrf.mxu0
        %v1164 = vpop.f32.mrf.mxu0
        %v1165 = vadd.f32 %v873, %v1164
        %v1166 = vpop.f32.mrf.mxu0
        %1167 = vmatprep.mubr.bf16.mxu0 0
        %1168 = vmatmul.mubr.bf16.gmra.mxu0 %v1075
        %v1169 = vpop.f32.mrf.mxu0
        %v1170 = vadd.f32 %v878, %v1169
        %v1171 = vpop.f32.mrf.mxu0
        %v1172 = vpop.f32.mrf.mxu0
        %v1173 = vadd.f32 %v881, %v1172
        %v1174 = vpop.f32.mrf.mxu0
        %1175 = vmatprep.mubr.bf16.mxu0 0
        %1176 = vmatmul.mubr.bf16.gmra.mxu0 %v1078
        %v1177 = vpop.f32.mrf.mxu0
        %v1178 = vadd.f32 %v886, %v1177
        %v1179 = vpop.f32.mrf.mxu0
        %v1180 = vpop.f32.mrf.mxu0
        %v1181 = vadd.f32 %v889, %v1180
        %v1182 = vpop.f32.mrf.mxu0
        %1183 = vmatprep.mubr.bf16.mxu0 0
        %1184 = vmatmul.mubr.bf16.gmra.mxu0 %v1081
        %v1185 = vpop.f32.mrf.mxu0
        %v1186 = vadd.f32 %v894, %v1185
        %v1187 = vpop.f32.mrf.mxu0
        %v1188 = vpop.f32.mrf.mxu0
        %v1189 = vadd.f32 %v897, %v1188
        %v1190 = vpop.f32.mrf.mxu0
        %1191 = vmatprep.mubr.bf16.mxu0 0
        %1192 = vmatmul.mubr.bf16.gmra.mxu0 %v1084
        %v1193 = vpop.f32.mrf.mxu0
        %v1194 = vadd.f32 %v902, %v1193
        %v1195 = vpop.f32.mrf.mxu0
        %v1196 = vpop.f32.mrf.mxu0
        %v1197 = vadd.f32 %v905, %v1196
        %v1198 = vpop.f32.mrf.mxu0
        %1199 = vmatprep.mubr.bf16.mxu0 0
        %1200 = vmatmul.mubr.bf16.gmra.mxu0 %v1087
        %v1201 = vpop.f32.mrf.mxu0
        %v1202 = vadd.f32 %v910, %v1201
        %v1203 = vpop.f32.mrf.mxu0
        %v1204 = vpop.f32.mrf.mxu0
        %v1205 = vadd.f32 %v913, %v1204
        %v1206 = vpop.f32.mrf.mxu0
        %1207 = vmatprep.mubr.bf16.mxu0 0
        %1208 = vmatmul.mubr.bf16.gmra.mxu0 %v1090
        %v1209 = vpop.f32.mrf.mxu0
        %v1210 = vadd.f32 %v918, %v1209
        %v1211 = vpop.f32.mrf.mxu0
        %v1212 = vpop.f32.mrf.mxu0
        %v1213 = vadd.f32 %v921, %v1212
        %v1214 = vpop.f32.mrf.mxu0
        %1215 = vmatprep.mubr.bf16.mxu0 0
        %1216 = vmatmul.mubr.bf16.gmra.mxu0 %v1093
        %v1217 = vpop.f32.mrf.mxu0
        %v1218 = vadd.f32 %v926, %v1217
        %v1219 = vpop.f32.mrf.mxu0
        %v1220 = vpop.f32.mrf.mxu0
        %v1221 = vadd.f32 %v929, %v1220
        %v1222 = vpop.f32.mrf.mxu0
        %1223 = vmatprep.mubr.bf16.mxu0 0
        %1224 = vmatmul.mubr.bf16.gmra.mxu0 %v1096
        %v1225 = vpop.f32.mrf.mxu0
        %v1226 = vadd.f32 %v934, %v1225
        %v1227 = vpop.f32.mrf.mxu0
        %v1228 = vpop.f32.mrf.mxu0
        %v1229 = vadd.f32 %v937, %v1228
        %v1230 = vpop.f32.mrf.mxu0
        %1231 = vmatprep.mubr.bf16.mxu0 0
        %1232 = vmatmul.mubr.bf16.gmra.mxu0 %v1099
        %v1233 = vpop.f32.mrf.mxu0
        %v1234 = vadd.f32 %v942, %v1233
        %v1235 = vpop.f32.mrf.mxu0
        %v1236 = vpop.f32.mrf.mxu0
        %v1237 = vadd.f32 %v945, %v1236
        %v1238 = vpop.f32.mrf.mxu0
        %1239 = vmatprep.mubr.bf16.mxu0 0
        %1240 = vmatmul.mubr.bf16.gmra.mxu0 %v1102
        %v1241 = vpop.f32.mrf.mxu0
        %v1242 = vadd.f32 %v950, %v1241
        %v1243 = vpop.f32.mrf.mxu0
        %v1244 = vpop.f32.mrf.mxu0
        %v1245 = vadd.f32 %v953, %v1244
        %v1246 = vpop.f32.mrf.mxu0
        %1247 = vmatprep.mubr.bf16.mxu0 0
        %1248 = vmatmul.mubr.bf16.gmra.mxu0 %v1105
        %v1249 = vpop.f32.mrf.mxu0
        %v1250 = vadd.f32 %v958, %v1249
        %v1251 = vpop.f32.mrf.mxu0
        %v1252 = vpop.f32.mrf.mxu0
        %v1253 = vadd.f32 %v961, %v1252
        %v1254 = vpop.f32.mrf.mxu0
        %1255 = vmatprep.mubr.bf16.mxu0 0
        %1256 = vmatmul.mubr.bf16.gmra.mxu0 %v1108
        %v1257 = vpop.f32.mrf.mxu0
        %v1258 = vadd.f32 %v966, %v1257
        %v1259 = vpop.f32.mrf.mxu0
        %v1260 = vpop.f32.mrf.mxu0
        %v1261 = vadd.f32 %v969, %v1260
        %v1262 = vpop.f32.mrf.mxu0
        %1263 = vmatprep.mubr.bf16.mxu0 0
        %1264 = vmatmul.mubr.bf16.gmra.mxu0 %v1111
        %v1265 = vpop.f32.mrf.mxu0
        %v1266 = vadd.f32 %v974, %v1265
        %v1267 = vpop.f32.mrf.mxu0
        %v1268 = vpop.f32.mrf.mxu0
        %v1269 = vadd.f32 %v977, %v1268
        %v1270 = vpop.f32.mrf.mxu0
        %1271 = vmatprep.mubr.bf16.mxu0 0
        %1272 = vmatmul.mubr.bf16.gmra.mxu0 %v1114
        %v1273 = vpop.f32.mrf.mxu0
        %v1274 = vadd.f32 %v982, %v1273
        %v1275 = vpop.f32.mrf.mxu0
        %v1276 = vpop.f32.mrf.mxu0
        %v1277 = vadd.f32 %v985, %v1276
        %v1278 = vpop.f32.mrf.mxu0
        %1279 = vdwg.mxu0
        %vm1296 = vcmask 1042432
        %vm1297 = vcmask 1046532
        %vm1298 = vmor %vm1296, %vm1297
        %v1299 = vrot.slane %v282, 5
        %v1300 = vrot.slane %v1299, 4
        %v1301 = vrot.slane %v283, 5
        %v1302 = vsel %vm1298, %v1300, %v1301
        %v1303 = vrot.slane %v1301, 4
        %v1304 = vrot.slane %v284, 5
        %v1305 = vsel %vm1298, %v1303, %v1304
        %v1306 = vrot.slane %v285, 5
        %v1307 = vrot.slane %v1306, 4
        %v1308 = vrot.slane %v286, 5
        %v1309 = vsel %vm1298, %v1307, %v1308
        %v1310 = vrot.slane %v1308, 4
        %v1311 = vrot.slane %v287, 5
        %v1312 = vsel %vm1298, %v1310, %v1311
        %v1313 = vrot.slane %v288, 5
        %v1314 = vrot.slane %v1313, 4
        %v1315 = vrot.slane %v289, 5
        %v1316 = vsel %vm1298, %v1314, %v1315
        %v1317 = vrot.slane %v1315, 4
        %v1318 = vrot.slane %v290, 5
        %v1319 = vsel %vm1298, %v1317, %v1318
        %v1320 = vrot.slane %v291, 5
        %v1321 = vrot.slane %v1320, 4
        %v1322 = vrot.slane %v292, 5
        %v1323 = vsel %vm1298, %v1321, %v1322
        %v1324 = vrot.slane %v1322, 4
        %v1325 = vrot.slane %v293, 5
        %v1326 = vsel %vm1298, %v1324, %v1325
        %v1327 = vrot.slane %v294, 5
        %v1328 = vrot.slane %v1327, 4
        %v1329 = vrot.slane %v295, 5
        %v1330 = vsel %vm1298, %v1328, %v1329
        %v1331 = vrot.slane %v1329, 4
        %v1332 = vrot.slane %v296, 5
        %v1333 = vsel %vm1298, %v1331, %v1332
        %v1334 = vrot.slane %v297, 5
        %v1335 = vrot.slane %v1334, 4
        %v1336 = vrot.slane %v298, 5
        %v1337 = vsel %vm1298, %v1335, %v1336
        %v1338 = vrot.slane %v1336, 4
        %v1339 = vrot.slane %v299, 5
        %v1340 = vsel %vm1298, %v1338, %v1339
        %v1341 = vrot.slane %v300, 5
        %v1342 = vrot.slane %v1341, 4
        %v1343 = vrot.slane %v301, 5
        %v1344 = vsel %vm1298, %v1342, %v1343
        %v1345 = vrot.slane %v1343, 4
        %v1346 = vrot.slane %v302, 5
        %v1347 = vsel %vm1298, %v1345, %v1346
        %v1348 = vrot.slane %v303, 5
        %v1349 = vrot.slane %v1348, 4
        %v1350 = vrot.slane %v304, 5
        %v1351 = vsel %vm1298, %v1349, %v1350
        %v1352 = vrot.slane %v1350, 4
        %v1353 = vrot.slane %v305, 5
        %v1354 = vsel %vm1298, %v1352, %v1353
        %v1355 = vrot.slane %v306, 5
        %v1356 = vrot.slane %v1355, 4
        %v1357 = vrot.slane %v307, 5
        %v1358 = vsel %vm1298, %v1356, %v1357
        %v1359 = vrot.slane %v1357, 4
        %v1360 = vrot.slane %v308, 5
        %v1361 = vsel %vm1298, %v1359, %v1360
        %v1362 = vrot.slane %v309, 5
        %v1363 = vrot.slane %v1362, 4
        %v1364 = vrot.slane %v310, 5
        %v1365 = vsel %vm1298, %v1363, %v1364
        %v1366 = vrot.slane %v1364, 4
        %v1367 = vrot.slane %v311, 5
        %v1368 = vsel %vm1298, %v1366, %v1367
        %v1369 = vrot.slane %v312, 5
        %v1370 = vrot.slane %v1369, 4
        %v1371 = vrot.slane %v313, 5
        %v1372 = vsel %vm1298, %v1370, %v1371
        %v1373 = vrot.slane %v1371, 4
        %v1374 = vrot.slane %v314, 5
        %v1375 = vsel %vm1298, %v1373, %v1374
        %v1376 = vrot.slane %v315, 5
        %v1377 = vrot.slane %v1376, 4
        %v1378 = vrot.slane %v316, 5
        %v1379 = vsel %vm1298, %v1377, %v1378
        %v1380 = vrot.slane %v1378, 4
        %v1381 = vrot.slane %v317, 5
        %v1382 = vsel %vm1298, %v1380, %v1381
        %v1383 = vrot.slane %v318, 5
        %v1384 = vrot.slane %v1383, 4
        %v1385 = vrot.slane %v319, 5
        %v1386 = vsel %vm1298, %v1384, %v1385
        %v1387 = vrot.slane %v1385, 4
        %v1388 = vrot.slane %v320, 5
        %v1389 = vsel %vm1298, %v1387, %v1388
        %v1390 = vrot.slane %v321, 5
        %v1391 = vrot.slane %v1390, 4
        %v1392 = vrot.slane %v322, 5
        %v1393 = vsel %vm1298, %v1391, %v1392
        %v1394 = vrot.slane %v1392, 4
        %v1395 = vrot.slane %v323, 5
        %v1396 = vsel %vm1298, %v1394, %v1395
        %v1397 = vrot.slane %v324, 5
        %v1398 = vrot.slane %v1397, 4
        %v1399 = vrot.slane %v325, 5
        %v1400 = vsel %vm1298, %v1398, %v1399
        %v1401 = vrot.slane %v1399, 4
        %v1402 = vrot.slane %v326, 5
        %v1403 = vsel %vm1298, %v1401, %v1402
        %v1404 = vrot.slane %v327, 5
        %v1405 = vrot.slane %v1404, 4
        %v1406 = vrot.slane %v328, 5
        %v1407 = vsel %vm1298, %v1405, %v1406
        %v1408 = vrot.slane %v1406, 4
        %v1409 = vrot.slane %v329, 5
        %v1410 = vsel %vm1298, %v1408, %v1409
        %s1411 = scalar_lea.vmem %s2, 4
        %v1412 = vld [vmem:[%s1411] sm:$0x3]
        %v1413 = vunpack.c.l.b16 %v1302
        %v1414 = vunpack.c.l.b16 %v1305
        %v1415 = vunpack.c.l.b16 %v1309
        %v1416 = vunpack.c.l.b16 %v1312
        %v1417 = vunpack.c.l.b16 %v1316
        %v1418 = vunpack.c.l.b16 %v1319
        %v1419 = vunpack.c.l.b16 %v1323
        %v1420 = vunpack.c.l.b16 %v1326
        %v1421 = vunpack.c.l.b16 %v1330
        %v1422 = vunpack.c.l.b16 %v1333
        %v1423 = vunpack.c.l.b16 %v1337
        %v1424 = vunpack.c.l.b16 %v1340
        %v1425 = vunpack.c.l.b16 %v1344
        %v1426 = vunpack.c.l.b16 %v1347
        %v1427 = vunpack.c.l.b16 %v1351
        %v1428 = vunpack.c.l.b16 %v1354
        %v1429 = vunpack.c.l.b16 %v1358
        %v1430 = vunpack.c.l.b16 %v1361
        %v1431 = vunpack.c.l.b16 %v1365
        %v1432 = vunpack.c.l.b16 %v1368
        %v1433 = vunpack.c.l.b16 %v1372
        %v1434 = vunpack.c.l.b16 %v1375
        %v1435 = vunpack.c.l.b16 %v1379
        %v1436 = vunpack.c.l.b16 %v1382
        %v1437 = vunpack.c.l.b16 %v1386
        %v1438 = vunpack.c.l.b16 %v1389
        %v1439 = vunpack.c.l.b16 %v1393
        %v1440 = vunpack.c.l.b16 %v1396
        %v1441 = vunpack.c.l.b16 %v1400
        %v1442 = vunpack.c.l.b16 %v1403
        %v1443 = vunpack.c.l.b16 %v1407
        %v1444 = vunpack.c.l.b16 %v1410
        %v1445 = vpack.c.b16 %v1414, %v1413
        %v1446 = vpack.c.b16 %v1416, %v1415
        %v1447 = vpack.c.b16 %v1418, %v1417
        %v1448 = vpack.c.b16 %v1420, %v1419
        %v1449 = vpack.c.b16 %v1422, %v1421
        %v1450 = vpack.c.b16 %v1424, %v1423
        %v1451 = vpack.c.b16 %v1426, %v1425
        %v1452 = vpack.c.b16 %v1428, %v1427
        %v1453 = vpack.c.b16 %v1430, %v1429
        %v1454 = vpack.c.b16 %v1432, %v1431
        %v1455 = vpack.c.b16 %v1434, %v1433
        %v1456 = vpack.c.b16 %v1436, %v1435
        %v1457 = vpack.c.b16 %v1438, %v1437
        %v1458 = vpack.c.b16 %v1440, %v1439
        %v1459 = vpack.c.b16 %v1442, %v1441
        %v1460 = vpack.c.b16 %v1444, %v1443
        %v1462 = vsel %vm774, %v1445, 0
        %v1465 = vsel %vm774, %v1446, 0
        %v1468 = vsel %vm774, %v1447, 0
        %v1471 = vsel %vm774, %v1448, 0
        %v1474 = vsel %vm774, %v1449, 0
        %v1477 = vsel %vm774, %v1450, 0
        %v1480 = vsel %vm774, %v1451, 0
        %v1483 = vsel %vm774, %v1452, 0
        %v1486 = vsel %vm774, %v1453, 0
        %v1489 = vsel %vm774, %v1454, 0
        %v1492 = vsel %vm774, %v1455, 0
        %v1495 = vsel %vm774, %v1456, 0
        %v1498 = vsel %vm774, %v1457, 0
        %v1501 = vsel %vm774, %v1458, 0
        %v1504 = vsel %vm774, %v1459, 0
        %v1507 = vsel %vm774, %v1460, 0
        %v1510 = vsel %vm823, %v1412, 0
        %1512 = vmatprep.subr.bf16.mxu0 0
        %1513 = vmatpush1.bf16.msra.mxu0 0
        %1514 = vmatprep.subr.bf16.mxu0 0
        %1515 = vmatpush1.bf16.msra.mxu0 0
        %1516 = vmatprep.subr.bf16.mxu0 0
        %1517 = vmatpush1.bf16.msra.mxu0 0
        %1518 = vmatprep.subr.bf16.mxu0 0
        %1519 = vmatpush1.bf16.msra.mxu0 0
        %1520 = vmatprep.subr.bf16.mxu0 0
        %1521 = vmatpush1.bf16.msra.mxu0 0
        %1522 = vmatprep.subr.bf16.mxu0 0
        %1523 = vmatpush1.bf16.msra.mxu0 0
        %1524 = vmatprep.subr.bf16.mxu0 0
        %1525 = vmatpush1.bf16.msra.mxu0 0
        %1526 = vmatprep.subr.bf16.mxu0 0
        %1527 = vmatpush1.bf16.msra.mxu0 %v1510
        %1528 = vmatprep.subr.bf16.mxu0 0
        %1529 = vmatpush2.bf16.msra.mxu0 0
        %1530 = vmatprep.subr.bf16.mxu0 0
        %1531 = vmatpush2.bf16.msra.mxu0 0
        %1532 = vmatprep.subr.bf16.mxu0 0
        %1533 = vmatpush2.bf16.msra.mxu0 0
        %1534 = vmatprep.subr.bf16.mxu0 0
        %1535 = vmatpush2.bf16.msra.mxu0 0
        %1536 = vmatprep.subr.bf16.mxu0 0
        %1537 = vmatpush2.bf16.msra.mxu0 0
        %1538 = vmatprep.subr.bf16.mxu0 0
        %1539 = vmatpush2.bf16.msra.mxu0 0
        %1540 = vmatprep.subr.bf16.mxu0 0
        %1541 = vmatpush2.bf16.msra.mxu0 0
        %1542 = vmatprep.subr.bf16.mxu0 0
        %1543 = vmatpush2.bf16.msra.mxu0 0
        %1544 = vmatprep.mubr.bf16.mxu0 0
        %1545 = vmatmul.mubr.bf16.gmra.mxu0 %v1462
        %v1546 = vpop.f32.mrf.mxu0
        %v1547 = vadd.f32 0.0, %v1546
        %v1548 = vpop.f32.mrf.mxu0
        %v1549 = vpop.f32.mrf.mxu0
        %v1550 = vadd.f32 0.0, %v1549
        %v1551 = vpop.f32.mrf.mxu0
        %1552 = vmatprep.mubr.bf16.mxu0 0
        %1553 = vmatmul.mubr.bf16.gmra.mxu0 %v1465
        %v1554 = vpop.f32.mrf.mxu0
        %v1555 = vadd.f32 0.0, %v1554
        %v1556 = vpop.f32.mrf.mxu0
        %v1557 = vpop.f32.mrf.mxu0
        %v1558 = vadd.f32 0.0, %v1557
        %v1559 = vpop.f32.mrf.mxu0
        %1560 = vmatprep.mubr.bf16.mxu0 0
        %1561 = vmatmul.mubr.bf16.gmra.mxu0 %v1468
        %v1562 = vpop.f32.mrf.mxu0
        %v1563 = vadd.f32 0.0, %v1562
        %v1564 = vpop.f32.mrf.mxu0
        %v1565 = vpop.f32.mrf.mxu0
        %v1566 = vadd.f32 0.0, %v1565
        %v1567 = vpop.f32.mrf.mxu0
        %1568 = vmatprep.mubr.bf16.mxu0 0
        %1569 = vmatmul.mubr.bf16.gmra.mxu0 %v1471
        %v1570 = vpop.f32.mrf.mxu0
        %v1571 = vadd.f32 0.0, %v1570
        %v1572 = vpop.f32.mrf.mxu0
        %v1573 = vpop.f32.mrf.mxu0
        %v1574 = vadd.f32 0.0, %v1573
        %v1575 = vpop.f32.mrf.mxu0
        %1576 = vmatprep.mubr.bf16.mxu0 0
        %1577 = vmatmul.mubr.bf16.gmra.mxu0 %v1474
        %v1578 = vpop.f32.mrf.mxu0
        %v1579 = vadd.f32 0.0, %v1578
        %v1580 = vpop.f32.mrf.mxu0
        %v1581 = vpop.f32.mrf.mxu0
        %v1582 = vadd.f32 0.0, %v1581
        %v1583 = vpop.f32.mrf.mxu0
        %1584 = vmatprep.mubr.bf16.mxu0 0
        %1585 = vmatmul.mubr.bf16.gmra.mxu0 %v1477
        %v1586 = vpop.f32.mrf.mxu0
        %v1587 = vadd.f32 0.0, %v1586
        %v1588 = vpop.f32.mrf.mxu0
        %v1589 = vpop.f32.mrf.mxu0
        %v1590 = vadd.f32 0.0, %v1589
        %v1591 = vpop.f32.mrf.mxu0
        %1592 = vmatprep.mubr.bf16.mxu0 0
        %1593 = vmatmul.mubr.bf16.gmra.mxu0 %v1480
        %v1594 = vpop.f32.mrf.mxu0
        %v1595 = vadd.f32 0.0, %v1594
        %v1596 = vpop.f32.mrf.mxu0
        %v1597 = vpop.f32.mrf.mxu0
        %v1598 = vadd.f32 0.0, %v1597
        %v1599 = vpop.f32.mrf.mxu0
        %1600 = vmatprep.mubr.bf16.mxu0 0
        %1601 = vmatmul.mubr.bf16.gmra.mxu0 %v1483
        %v1602 = vpop.f32.mrf.mxu0
        %v1603 = vadd.f32 0.0, %v1602
        %v1604 = vpop.f32.mrf.mxu0
        %v1605 = vpop.f32.mrf.mxu0
        %v1606 = vadd.f32 0.0, %v1605
        %v1607 = vpop.f32.mrf.mxu0
        %1608 = vmatprep.mubr.bf16.mxu0 0
        %1609 = vmatmul.mubr.bf16.gmra.mxu0 %v1486
        %v1610 = vpop.f32.mrf.mxu0
        %v1611 = vadd.f32 0.0, %v1610
        %v1612 = vpop.f32.mrf.mxu0
        %v1613 = vpop.f32.mrf.mxu0
        %v1614 = vadd.f32 0.0, %v1613
        %v1615 = vpop.f32.mrf.mxu0
        %1616 = vmatprep.mubr.bf16.mxu0 0
        %1617 = vmatmul.mubr.bf16.gmra.mxu0 %v1489
        %v1618 = vpop.f32.mrf.mxu0
        %v1619 = vadd.f32 0.0, %v1618
        %v1620 = vpop.f32.mrf.mxu0
        %v1621 = vpop.f32.mrf.mxu0
        %v1622 = vadd.f32 0.0, %v1621
        %v1623 = vpop.f32.mrf.mxu0
        %1624 = vmatprep.mubr.bf16.mxu0 0
        %1625 = vmatmul.mubr.bf16.gmra.mxu0 %v1492
        %v1626 = vpop.f32.mrf.mxu0
        %v1627 = vadd.f32 0.0, %v1626
        %v1628 = vpop.f32.mrf.mxu0
        %v1629 = vpop.f32.mrf.mxu0
        %v1630 = vadd.f32 0.0, %v1629
        %v1631 = vpop.f32.mrf.mxu0
        %1632 = vmatprep.mubr.bf16.mxu0 0
        %1633 = vmatmul.mubr.bf16.gmra.mxu0 %v1495
        %v1634 = vpop.f32.mrf.mxu0
        %v1635 = vadd.f32 0.0, %v1634
        %v1636 = vpop.f32.mrf.mxu0
        %v1637 = vpop.f32.mrf.mxu0
        %v1638 = vadd.f32 0.0, %v1637
        %v1639 = vpop.f32.mrf.mxu0
        %1640 = vmatprep.mubr.bf16.mxu0 0
        %1641 = vmatmul.mubr.bf16.gmra.mxu0 %v1498
        %v1642 = vpop.f32.mrf.mxu0
        %v1643 = vadd.f32 0.0, %v1642
        %v1644 = vpop.f32.mrf.mxu0
        %v1645 = vpop.f32.mrf.mxu0
        %v1646 = vadd.f32 0.0, %v1645
        %v1647 = vpop.f32.mrf.mxu0
        %1648 = vmatprep.mubr.bf16.mxu0 0
        %1649 = vmatmul.mubr.bf16.gmra.mxu0 %v1501
        %v1650 = vpop.f32.mrf.mxu0
        %v1651 = vadd.f32 0.0, %v1650
        %v1652 = vpop.f32.mrf.mxu0
        %v1653 = vpop.f32.mrf.mxu0
        %v1654 = vadd.f32 0.0, %v1653
        %v1655 = vpop.f32.mrf.mxu0
        %1656 = vmatprep.mubr.bf16.mxu0 0
        %1657 = vmatmul.mubr.bf16.gmra.mxu0 %v1504
        %v1658 = vpop.f32.mrf.mxu0
        %v1659 = vadd.f32 0.0, %v1658
        %v1660 = vpop.f32.mrf.mxu0
        %v1661 = vpop.f32.mrf.mxu0
        %v1662 = vadd.f32 0.0, %v1661
        %v1663 = vpop.f32.mrf.mxu0
        %1664 = vmatprep.mubr.bf16.mxu0 0
        %1665 = vmatmul.mubr.bf16.gmra.mxu0 %v1507
        %v1666 = vpop.f32.mrf.mxu0
        %v1667 = vadd.f32 0.0, %v1666
        %v1668 = vpop.f32.mrf.mxu0
        %v1669 = vpop.f32.mrf.mxu0
        %v1670 = vadd.f32 0.0, %v1669
        %v1671 = vpop.f32.mrf.mxu0
        %1672 = vdwg.mxu0
        %v1673 = vadd.f32 %v1154, %v1547
        %v1674 = vadd.f32 %v1157, %v1550
        %v1675 = vadd.f32 %v1162, %v1555
        %v1676 = vadd.f32 %v1165, %v1558
        %v1677 = vadd.f32 %v1170, %v1563
        %v1678 = vadd.f32 %v1173, %v1566
        %v1679 = vadd.f32 %v1178, %v1571
        %v1680 = vadd.f32 %v1181, %v1574
        %v1681 = vadd.f32 %v1186, %v1579
        %v1682 = vadd.f32 %v1189, %v1582
        %v1683 = vadd.f32 %v1194, %v1587
        %v1684 = vadd.f32 %v1197, %v1590
        %v1685 = vadd.f32 %v1202, %v1595
        %v1686 = vadd.f32 %v1205, %v1598
        %v1687 = vadd.f32 %v1210, %v1603
        %v1688 = vadd.f32 %v1213, %v1606
        %v1689 = vadd.f32 %v1218, %v1611
        %v1690 = vadd.f32 %v1221, %v1614
        %v1691 = vadd.f32 %v1226, %v1619
        %v1692 = vadd.f32 %v1229, %v1622
        %v1693 = vadd.f32 %v1234, %v1627
        %v1694 = vadd.f32 %v1237, %v1630
        %v1695 = vadd.f32 %v1242, %v1635
        %v1696 = vadd.f32 %v1245, %v1638
        %v1697 = vadd.f32 %v1250, %v1643
        %v1698 = vadd.f32 %v1253, %v1646
        %v1699 = vadd.f32 %v1258, %v1651
        %v1700 = vadd.f32 %v1261, %v1654
        %v1701 = vadd.f32 %v1266, %v1659
        %v1702 = vadd.f32 %v1269, %v1662
        %v1703 = vadd.f32 %v1274, %v1667
        %v1704 = vadd.f32 %v1277, %v1670
        %s1705 = scalar_lea.vmem %s2, 6
        %v1706 = vld [vmem:[%s1705] sm:$0x3]
        %v1709 = vunpack.c.l.b16 %v330
        %v1710 = vunpack.c.l.b16 %v331
        %v1711 = vpack.c.b16 %v1710, %v1709
        %v1713 = vsel %vm774, %v1711, 0
        %v1716 = vsel %vm823, %v1706, 0
        %1718 = vmatprep.subr.bf16.mxu0 0
        %1719 = vmatpush1.bf16.msra.mxu0 0
        %1720 = vmatprep.subr.bf16.mxu0 0
        %1721 = vmatpush1.bf16.msra.mxu0 0
        %1722 = vmatprep.subr.bf16.mxu0 0
        %1723 = vmatpush1.bf16.msra.mxu0 0
        %1724 = vmatprep.subr.bf16.mxu0 0
        %1725 = vmatpush1.bf16.msra.mxu0 0
        %1726 = vmatprep.subr.bf16.mxu0 0
        %1727 = vmatpush1.bf16.msra.mxu0 0
        %1728 = vmatprep.subr.bf16.mxu0 0
        %1729 = vmatpush1.bf16.msra.mxu0 0
        %1730 = vmatprep.subr.bf16.mxu0 0
        %1731 = vmatpush1.bf16.msra.mxu0 0
        %1732 = vmatprep.subr.bf16.mxu0 0
        %1733 = vmatpush1.bf16.msra.mxu0 %v1716
        %1734 = vmatprep.subr.bf16.mxu0 0
        %1735 = vmatpush2.bf16.msra.mxu0 0
        %1736 = vmatprep.subr.bf16.mxu0 0
        %1737 = vmatpush2.bf16.msra.mxu0 0
        %1738 = vmatprep.subr.bf16.mxu0 0
        %1739 = vmatpush2.bf16.msra.mxu0 0
        %1740 = vmatprep.subr.bf16.mxu0 0
        %1741 = vmatpush2.bf16.msra.mxu0 0
        %1742 = vmatprep.subr.bf16.mxu0 0
        %1743 = vmatpush2.bf16.msra.mxu0 0
        %1744 = vmatprep.subr.bf16.mxu0 0
        %1745 = vmatpush2.bf16.msra.mxu0 0
        %1746 = vmatprep.subr.bf16.mxu0 0
        %1747 = vmatpush2.bf16.msra.mxu0 0
        %1748 = vmatprep.subr.bf16.mxu0 0
        %1749 = vmatpush2.bf16.msra.mxu0 0
        %1750 = vmatprep.mubr.bf16.mxu0 0
        %1751 = vmatmul.mubr.bf16.gmra.mxu0 %v1072
        %v1752 = vpop.f32.mrf.mxu0
        %v1753 = vadd.f32 0.0, %v1752
        %v1754 = vpop.f32.mrf.mxu0
        %v1755 = vpop.f32.mrf.mxu0
        %v1756 = vadd.f32 0.0, %v1755
        %v1757 = vpop.f32.mrf.mxu0
        %1758 = vmatprep.mubr.bf16.mxu0 0
        %1759 = vmatmul.mubr.bf16.gmra.mxu0 %v1075
        %v1760 = vpop.f32.mrf.mxu0
        %v1761 = vadd.f32 0.0, %v1760
        %v1762 = vpop.f32.mrf.mxu0
        %v1763 = vpop.f32.mrf.mxu0
        %v1764 = vadd.f32 0.0, %v1763
        %v1765 = vpop.f32.mrf.mxu0
        %1766 = vmatprep.mubr.bf16.mxu0 0
        %1767 = vmatmul.mubr.bf16.gmra.mxu0 %v1078
        %v1768 = vpop.f32.mrf.mxu0
        %v1769 = vadd.f32 0.0, %v1768
        %v1770 = vpop.f32.mrf.mxu0
        %v1771 = vpop.f32.mrf.mxu0
        %v1772 = vadd.f32 0.0, %v1771
        %v1773 = vpop.f32.mrf.mxu0
        %1774 = vmatprep.mubr.bf16.mxu0 0
        %1775 = vmatmul.mubr.bf16.gmra.mxu0 %v1081
        %v1776 = vpop.f32.mrf.mxu0
        %v1777 = vadd.f32 0.0, %v1776
        %v1778 = vpop.f32.mrf.mxu0
        %v1779 = vpop.f32.mrf.mxu0
        %v1780 = vadd.f32 0.0, %v1779
        %v1781 = vpop.f32.mrf.mxu0
        %1782 = vmatprep.mubr.bf16.mxu0 0
        %1783 = vmatmul.mubr.bf16.gmra.mxu0 %v1084
        %v1784 = vpop.f32.mrf.mxu0
        %v1785 = vadd.f32 0.0, %v1784
        %v1786 = vpop.f32.mrf.mxu0
        %v1787 = vpop.f32.mrf.mxu0
        %v1788 = vadd.f32 0.0, %v1787
        %v1789 = vpop.f32.mrf.mxu0
        %1790 = vmatprep.mubr.bf16.mxu0 0
        %1791 = vmatmul.mubr.bf16.gmra.mxu0 %v1087
        %v1792 = vpop.f32.mrf.mxu0
        %v1793 = vadd.f32 0.0, %v1792
        %v1794 = vpop.f32.mrf.mxu0
        %v1795 = vpop.f32.mrf.mxu0
        %v1796 = vadd.f32 0.0, %v1795
        %v1797 = vpop.f32.mrf.mxu0
        %1798 = vmatprep.mubr.bf16.mxu0 0
        %1799 = vmatmul.mubr.bf16.gmra.mxu0 %v1090
        %v1800 = vpop.f32.mrf.mxu0
        %v1801 = vadd.f32 0.0, %v1800
        %v1802 = vpop.f32.mrf.mxu0
        %v1803 = vpop.f32.mrf.mxu0
        %v1804 = vadd.f32 0.0, %v1803
        %v1805 = vpop.f32.mrf.mxu0
        %1806 = vmatprep.mubr.bf16.mxu0 0
        %1807 = vmatmul.mubr.bf16.gmra.mxu0 %v1093
        %v1808 = vpop.f32.mrf.mxu0
        %v1809 = vadd.f32 0.0, %v1808
        %v1810 = vpop.f32.mrf.mxu0
        %v1811 = vpop.f32.mrf.mxu0
        %v1812 = vadd.f32 0.0, %v1811
        %v1813 = vpop.f32.mrf.mxu0
        %1814 = vmatprep.mubr.bf16.mxu0 0
        %1815 = vmatmul.mubr.bf16.gmra.mxu0 %v1096
        %v1816 = vpop.f32.mrf.mxu0
        %v1817 = vadd.f32 0.0, %v1816
        %v1818 = vpop.f32.mrf.mxu0
        %v1819 = vpop.f32.mrf.mxu0
        %v1820 = vadd.f32 0.0, %v1819
        %v1821 = vpop.f32.mrf.mxu0
        %1822 = vmatprep.mubr.bf16.mxu0 0
        %1823 = vmatmul.mubr.bf16.gmra.mxu0 %v1099
        %v1824 = vpop.f32.mrf.mxu0
        %v1825 = vadd.f32 0.0, %v1824
        %v1826 = vpop.f32.mrf.mxu0
        %v1827 = vpop.f32.mrf.mxu0
        %v1828 = vadd.f32 0.0, %v1827
        %v1829 = vpop.f32.mrf.mxu0
        %1830 = vmatprep.mubr.bf16.mxu0 0
        %1831 = vmatmul.mubr.bf16.gmra.mxu0 %v1102
        %v1832 = vpop.f32.mrf.mxu0
        %v1833 = vadd.f32 0.0, %v1832
        %v1834 = vpop.f32.mrf.mxu0
        %v1835 = vpop.f32.mrf.mxu0
        %v1836 = vadd.f32 0.0, %v1835
        %v1837 = vpop.f32.mrf.mxu0
        %1838 = vmatprep.mubr.bf16.mxu0 0
        %1839 = vmatmul.mubr.bf16.gmra.mxu0 %v1105
        %v1840 = vpop.f32.mrf.mxu0
        %v1841 = vadd.f32 0.0, %v1840
        %v1842 = vpop.f32.mrf.mxu0
        %v1843 = vpop.f32.mrf.mxu0
        %v1844 = vadd.f32 0.0, %v1843
        %v1845 = vpop.f32.mrf.mxu0
        %1846 = vmatprep.mubr.bf16.mxu0 0
        %1847 = vmatmul.mubr.bf16.gmra.mxu0 %v1108
        %v1848 = vpop.f32.mrf.mxu0
        %v1849 = vadd.f32 0.0, %v1848
        %v1850 = vpop.f32.mrf.mxu0
        %v1851 = vpop.f32.mrf.mxu0
        %v1852 = vadd.f32 0.0, %v1851
        %v1853 = vpop.f32.mrf.mxu0
        %1854 = vmatprep.mubr.bf16.mxu0 0
        %1855 = vmatmul.mubr.bf16.gmra.mxu0 %v1111
        %v1856 = vpop.f32.mrf.mxu0
        %v1857 = vadd.f32 0.0, %v1856
        %v1858 = vpop.f32.mrf.mxu0
        %v1859 = vpop.f32.mrf.mxu0
        %v1860 = vadd.f32 0.0, %v1859
        %v1861 = vpop.f32.mrf.mxu0
        %1862 = vmatprep.mubr.bf16.mxu0 0
        %1863 = vmatmul.mubr.bf16.gmra.mxu0 %v1114
        %v1864 = vpop.f32.mrf.mxu0
        %v1865 = vadd.f32 0.0, %v1864
        %v1866 = vpop.f32.mrf.mxu0
        %v1867 = vpop.f32.mrf.mxu0
        %v1868 = vadd.f32 0.0, %v1867
        %v1869 = vpop.f32.mrf.mxu0
        %1870 = vmatprep.mubr.bf16.mxu0 0
        %1871 = vmatmul.mubr.bf16.gmra.mxu0 %v1713
        %v1872 = vpop.f32.mrf.mxu0
        %v1873 = vadd.f32 0.0, %v1872
        %v1874 = vpop.f32.mrf.mxu0
        %v1875 = vpop.f32.mrf.mxu0
        %v1876 = vadd.f32 0.0, %v1875
        %v1877 = vpop.f32.mrf.mxu0
        %1878 = vdwg.mxu0
        %v1879 = vadd.f32 %v1673, %v1753
        %v1880 = vadd.f32 %v1674, %v1756
        %v1881 = vadd.f32 %v1675, %v1761
        %v1882 = vadd.f32 %v1676, %v1764
        %v1883 = vadd.f32 %v1677, %v1769
        %v1884 = vadd.f32 %v1678, %v1772
        %v1885 = vadd.f32 %v1679, %v1777
        %v1886 = vadd.f32 %v1680, %v1780
        %v1887 = vadd.f32 %v1681, %v1785
        %v1888 = vadd.f32 %v1682, %v1788
        %v1889 = vadd.f32 %v1683, %v1793
        %v1890 = vadd.f32 %v1684, %v1796
        %v1891 = vadd.f32 %v1685, %v1801
        %v1892 = vadd.f32 %v1686, %v1804
        %v1893 = vadd.f32 %v1687, %v1809
        %v1894 = vadd.f32 %v1688, %v1812
        %v1895 = vadd.f32 %v1689, %v1817
        %v1896 = vadd.f32 %v1690, %v1820
        %v1897 = vadd.f32 %v1691, %v1825
        %v1898 = vadd.f32 %v1692, %v1828
        %v1899 = vadd.f32 %v1693, %v1833
        %v1900 = vadd.f32 %v1694, %v1836
        %v1901 = vadd.f32 %v1695, %v1841
        %v1902 = vadd.f32 %v1696, %v1844
        %v1903 = vadd.f32 %v1697, %v1849
        %v1904 = vadd.f32 %v1698, %v1852
        %v1905 = vadd.f32 %v1699, %v1857
        %v1906 = vadd.f32 %v1700, %v1860
        %v1907 = vadd.f32 %v1701, %v1865
        %v1908 = vadd.f32 %v1702, %v1868
        %v1909 = vadd.f32 %v1703, %v1873
        %v1910 = vadd.f32 %v1704, %v1876
        %v1912 = vshrl.u32 %v330, 16
        %v1914 = vrot.slane %v1912, 4
        %v1915 = vshll.u32 %v330, 16
        %v1917 = vrot.slane %v1915, 5
        %v1918 = vor.u32 %v1914, %v1917
        %v1919 = vrot.slane %v1918, 4
        %v1921 = vshll.u32 %v331, 16
        %v1923 = vrot.slane %v1921, 5
        %v1924 = vsel %vm339, %v1919, %v1923
        %v1925 = vshrl.u32 %v331, 16
        %v1927 = vrot.slane %v1925, 4
        %v1928 = vor.u32 %v1927, %v1923
        %v1929 = vrot.slane %v1928, 4
        %v1931 = vshll.u32 %v332, 16
        %v1933 = vrot.slane %v1931, 5
        %v1934 = vsel %vm339, %v1929, %v1933
        %s1935 = scalar_lea.vmem %s2, 8
        %v1936 = vld [vmem:[%s1935] sm:$0x3]
        %v1937 = vunpack.c.l.b16 %v1924
        %v1938 = vunpack.c.l.b16 %v1934
        %v1939 = vpack.c.b16 %v1938, %v1937
        %v1941 = vsel %vm774, %v1939, 0
        %v1944 = vsel %vm823, %v1936, 0
        %1946 = vmatprep.subr.bf16.mxu0 0
        %1947 = vmatpush1.bf16.msra.mxu0 0
        %1948 = vmatprep.subr.bf16.mxu0 0
        %1949 = vmatpush1.bf16.msra.mxu0 0
        %1950 = vmatprep.subr.bf16.mxu0 0
        %1951 = vmatpush1.bf16.msra.mxu0 0
        %1952 = vmatprep.subr.bf16.mxu0 0
        %1953 = vmatpush1.bf16.msra.mxu0 0
        %1954 = vmatprep.subr.bf16.mxu0 0
        %1955 = vmatpush1.bf16.msra.mxu0 0
        %1956 = vmatprep.subr.bf16.mxu0 0
        %1957 = vmatpush1.bf16.msra.mxu0 0
        %1958 = vmatprep.subr.bf16.mxu0 0
        %1959 = vmatpush1.bf16.msra.mxu0 0
        %1960 = vmatprep.subr.bf16.mxu0 0
        %1961 = vmatpush1.bf16.msra.mxu0 %v1944
        %1962 = vmatprep.subr.bf16.mxu0 0
        %1963 = vmatpush2.bf16.msra.mxu0 0
        %1964 = vmatprep.subr.bf16.mxu0 0
        %1965 = vmatpush2.bf16.msra.mxu0 0
        %1966 = vmatprep.subr.bf16.mxu0 0
        %1967 = vmatpush2.bf16.msra.mxu0 0
        %1968 = vmatprep.subr.bf16.mxu0 0
        %1969 = vmatpush2.bf16.msra.mxu0 0
        %1970 = vmatprep.subr.bf16.mxu0 0
        %1971 = vmatpush2.bf16.msra.mxu0 0
        %1972 = vmatprep.subr.bf16.mxu0 0
        %1973 = vmatpush2.bf16.msra.mxu0 0
        %1974 = vmatprep.subr.bf16.mxu0 0
        %1975 = vmatpush2.bf16.msra.mxu0 0
        %1976 = vmatprep.subr.bf16.mxu0 0
        %1977 = vmatpush2.bf16.msra.mxu0 0
        %1978 = vmatprep.mubr.bf16.mxu0 0
        %1979 = vmatmul.mubr.bf16.gmra.mxu0 %v779
        %v1980 = vpop.f32.mrf.mxu0
        %v1981 = vadd.f32 0.0, %v1980
        %v1982 = vpop.f32.mrf.mxu0
        %v1983 = vpop.f32.mrf.mxu0
        %v1984 = vadd.f32 0.0, %v1983
        %v1985 = vpop.f32.mrf.mxu0
        %1986 = vmatprep.mubr.bf16.mxu0 0
        %1987 = vmatmul.mubr.bf16.gmra.mxu0 %v782
        %v1988 = vpop.f32.mrf.mxu0
        %v1989 = vadd.f32 0.0, %v1988
        %v1990 = vpop.f32.mrf.mxu0
        %v1991 = vpop.f32.mrf.mxu0
        %v1992 = vadd.f32 0.0, %v1991
        %v1993 = vpop.f32.mrf.mxu0
        %1994 = vmatprep.mubr.bf16.mxu0 0
        %1995 = vmatmul.mubr.bf16.gmra.mxu0 %v785
        %v1996 = vpop.f32.mrf.mxu0
        %v1997 = vadd.f32 0.0, %v1996
        %v1998 = vpop.f32.mrf.mxu0
        %v1999 = vpop.f32.mrf.mxu0
        %v2000 = vadd.f32 0.0, %v1999
        %v2001 = vpop.f32.mrf.mxu0
        %2002 = vmatprep.mubr.bf16.mxu0 0
        %2003 = vmatmul.mubr.bf16.gmra.mxu0 %v788
        %v2004 = vpop.f32.mrf.mxu0
        %v2005 = vadd.f32 0.0, %v2004
        %v2006 = vpop.f32.mrf.mxu0
        %v2007 = vpop.f32.mrf.mxu0
        %v2008 = vadd.f32 0.0, %v2007
        %v2009 = vpop.f32.mrf.mxu0
        %2010 = vmatprep.mubr.bf16.mxu0 0
        %2011 = vmatmul.mubr.bf16.gmra.mxu0 %v791
        %v2012 = vpop.f32.mrf.mxu0
        %v2013 = vadd.f32 0.0, %v2012
        %v2014 = vpop.f32.mrf.mxu0
        %v2015 = vpop.f32.mrf.mxu0
        %v2016 = vadd.f32 0.0, %v2015
        %v2017 = vpop.f32.mrf.mxu0
        %2018 = vmatprep.mubr.bf16.mxu0 0
        %2019 = vmatmul.mubr.bf16.gmra.mxu0 %v794
        %v2020 = vpop.f32.mrf.mxu0
        %v2021 = vadd.f32 0.0, %v2020
        %v2022 = vpop.f32.mrf.mxu0
        %v2023 = vpop.f32.mrf.mxu0
        %v2024 = vadd.f32 0.0, %v2023
        %v2025 = vpop.f32.mrf.mxu0
        %2026 = vmatprep.mubr.bf16.mxu0 0
        %2027 = vmatmul.mubr.bf16.gmra.mxu0 %v797
        %v2028 = vpop.f32.mrf.mxu0
        %v2029 = vadd.f32 0.0, %v2028
        %v2030 = vpop.f32.mrf.mxu0
        %v2031 = vpop.f32.mrf.mxu0
        %v2032 = vadd.f32 0.0, %v2031
        %v2033 = vpop.f32.mrf.mxu0
        %2034 = vmatprep.mubr.bf16.mxu0 0
        %2035 = vmatmul.mubr.bf16.gmra.mxu0 %v800
        %v2036 = vpop.f32.mrf.mxu0
        %v2037 = vadd.f32 0.0, %v2036
        %v2038 = vpop.f32.mrf.mxu0
        %v2039 = vpop.f32.mrf.mxu0
        %v2040 = vadd.f32 0.0, %v2039
        %v2041 = vpop.f32.mrf.mxu0
        %2042 = vmatprep.mubr.bf16.mxu0 0
        %2043 = vmatmul.mubr.bf16.gmra.mxu0 %v803
        %v2044 = vpop.f32.mrf.mxu0
        %v2045 = vadd.f32 0.0, %v2044
        %v2046 = vpop.f32.mrf.mxu0
        %v2047 = vpop.f32.mrf.mxu0
        %v2048 = vadd.f32 0.0, %v2047
        %v2049 = vpop.f32.mrf.mxu0
        %2050 = vmatprep.mubr.bf16.mxu0 0
        %2051 = vmatmul.mubr.bf16.gmra.mxu0 %v806
        %v2052 = vpop.f32.mrf.mxu0
        %v2053 = vadd.f32 0.0, %v2052
        %v2054 = vpop.f32.mrf.mxu0
        %v2055 = vpop.f32.mrf.mxu0
        %v2056 = vadd.f32 0.0, %v2055
        %v2057 = vpop.f32.mrf.mxu0
        %2058 = vmatprep.mubr.bf16.mxu0 0
        %2059 = vmatmul.mubr.bf16.gmra.mxu0 %v809
        %v2060 = vpop.f32.mrf.mxu0
        %v2061 = vadd.f32 0.0, %v2060
        %v2062 = vpop.f32.mrf.mxu0
        %v2063 = vpop.f32.mrf.mxu0
        %v2064 = vadd.f32 0.0, %v2063
        %v2065 = vpop.f32.mrf.mxu0
        %2066 = vmatprep.mubr.bf16.mxu0 0
        %2067 = vmatmul.mubr.bf16.gmra.mxu0 %v812
        %v2068 = vpop.f32.mrf.mxu0
        %v2069 = vadd.f32 0.0, %v2068
        %v2070 = vpop.f32.mrf.mxu0
        %v2071 = vpop.f32.mrf.mxu0
        %v2072 = vadd.f32 0.0, %v2071
        %v2073 = vpop.f32.mrf.mxu0
        %2074 = vmatprep.mubr.bf16.mxu0 0
        %2075 = vmatmul.mubr.bf16.gmra.mxu0 %v815
        %v2076 = vpop.f32.mrf.mxu0
        %v2077 = vadd.f32 0.0, %v2076
        %v2078 = vpop.f32.mrf.mxu0
        %v2079 = vpop.f32.mrf.mxu0
        %v2080 = vadd.f32 0.0, %v2079
        %v2081 = vpop.f32.mrf.mxu0
        %2082 = vmatprep.mubr.bf16.mxu0 0
        %2083 = vmatmul.mubr.bf16.gmra.mxu0 %v818
        %v2084 = vpop.f32.mrf.mxu0
        %v2085 = vadd.f32 0.0, %v2084
        %v2086 = vpop.f32.mrf.mxu0
        %v2087 = vpop.f32.mrf.mxu0
        %v2088 = vadd.f32 0.0, %v2087
        %v2089 = vpop.f32.mrf.mxu0
        %2090 = vmatprep.mubr.bf16.mxu0 0
        %2091 = vmatmul.mubr.bf16.gmra.mxu0 %v821
        %v2092 = vpop.f32.mrf.mxu0
        %v2093 = vadd.f32 0.0, %v2092
        %v2094 = vpop.f32.mrf.mxu0
        %v2095 = vpop.f32.mrf.mxu0
        %v2096 = vadd.f32 0.0, %v2095
        %v2097 = vpop.f32.mrf.mxu0
        %2098 = vmatprep.mubr.bf16.mxu0 0
        %2099 = vmatmul.mubr.bf16.gmra.mxu0 %v1941
        %v2100 = vpop.f32.mrf.mxu0
        %v2101 = vadd.f32 0.0, %v2100
        %v2102 = vpop.f32.mrf.mxu0
        %v2103 = vpop.f32.mrf.mxu0
        %v2104 = vadd.f32 0.0, %v2103
        %v2105 = vpop.f32.mrf.mxu0
        %2106 = vdwg.mxu0
        %v2107 = vadd.f32 %v1879, %v1981
        %v2108 = vadd.f32 %v1880, %v1984
        %v2109 = vadd.f32 %v1881, %v1989
        %v2110 = vadd.f32 %v1882, %v1992
        %v2111 = vadd.f32 %v1883, %v1997
        %v2112 = vadd.f32 %v1884, %v2000
        %v2113 = vadd.f32 %v1885, %v2005
        %v2114 = vadd.f32 %v1886, %v2008
        %v2115 = vadd.f32 %v1887, %v2013
        %v2116 = vadd.f32 %v1888, %v2016
        %v2117 = vadd.f32 %v1889, %v2021
        %v2118 = vadd.f32 %v1890, %v2024
        %v2119 = vadd.f32 %v1891, %v2029
        %v2120 = vadd.f32 %v1892, %v2032
        %v2121 = vadd.f32 %v1893, %v2037
        %v2122 = vadd.f32 %v1894, %v2040
        %v2123 = vadd.f32 %v1895, %v2045
        %v2124 = vadd.f32 %v1896, %v2048
        %v2125 = vadd.f32 %v1897, %v2053
        %v2126 = vadd.f32 %v1898, %v2056
        %v2127 = vadd.f32 %v1899, %v2061
        %v2128 = vadd.f32 %v1900, %v2064
        %v2129 = vadd.f32 %v1901, %v2069
        %v2130 = vadd.f32 %v1902, %v2072
        %v2131 = vadd.f32 %v1903, %v2077
        %v2132 = vadd.f32 %v1904, %v2080
        %v2133 = vadd.f32 %v1905, %v2085
        %v2134 = vadd.f32 %v1906, %v2088
        %v2135 = vadd.f32 %v1907, %v2093
        %v2136 = vadd.f32 %v1908, %v2096
        %v2137 = vadd.f32 %v1909, %v2101
        %v2138 = vadd.f32 %v1910, %v2104
        %v2140 = vrot.slane %v330, 5
        %v2141 = vrot.slane %v2140, 4
        %v2142 = vrot.slane %v331, 5
        %v2143 = vsel %vm1298, %v2141, %v2142
        %v2144 = vrot.slane %v2142, 4
        %v2145 = vrot.slane %v332, 5
        %v2146 = vsel %vm1298, %v2144, %v2145
        %s2147 = scalar_lea.vmem %s2, 10
        %v2148 = vld [vmem:[%s2147] sm:$0x3]
        %v2149 = vunpack.c.l.b16 %v2143
        %v2150 = vunpack.c.l.b16 %v2146
        %v2151 = vpack.c.b16 %v2150, %v2149
        %v2153 = vsel %vm774, %v2151, 0
        %v2156 = vsel %vm823, %v2148, 0
        %2158 = vmatprep.subr.bf16.mxu0 0
        %2159 = vmatpush1.bf16.msra.mxu0 0
        %2160 = vmatprep.subr.bf16.mxu0 0
        %2161 = vmatpush1.bf16.msra.mxu0 0
        %2162 = vmatprep.subr.bf16.mxu0 0
        %2163 = vmatpush1.bf16.msra.mxu0 0
        %2164 = vmatprep.subr.bf16.mxu0 0
        %2165 = vmatpush1.bf16.msra.mxu0 0
        %2166 = vmatprep.subr.bf16.mxu0 0
        %2167 = vmatpush1.bf16.msra.mxu0 0
        %2168 = vmatprep.subr.bf16.mxu0 0
        %2169 = vmatpush1.bf16.msra.mxu0 0
        %2170 = vmatprep.subr.bf16.mxu0 0
        %2171 = vmatpush1.bf16.msra.mxu0 0
        %2172 = vmatprep.subr.bf16.mxu0 0
        %2173 = vmatpush1.bf16.msra.mxu0 %v2156
        %2174 = vmatprep.subr.bf16.mxu0 0
        %2175 = vmatpush2.bf16.msra.mxu0 0
        %2176 = vmatprep.subr.bf16.mxu0 0
        %2177 = vmatpush2.bf16.msra.mxu0 0
        %2178 = vmatprep.subr.bf16.mxu0 0
        %2179 = vmatpush2.bf16.msra.mxu0 0
        %2180 = vmatprep.subr.bf16.mxu0 0
        %2181 = vmatpush2.bf16.msra.mxu0 0
        %2182 = vmatprep.subr.bf16.mxu0 0
        %2183 = vmatpush2.bf16.msra.mxu0 0
        %2184 = vmatprep.subr.bf16.mxu0 0
        %2185 = vmatpush2.bf16.msra.mxu0 0
        %2186 = vmatprep.subr.bf16.mxu0 0
        %2187 = vmatpush2.bf16.msra.mxu0 0
        %2188 = vmatprep.subr.bf16.mxu0 0
        %2189 = vmatpush2.bf16.msra.mxu0 0
        %2190 = vmatprep.mubr.bf16.mxu0 0
        %2191 = vmatmul.mubr.bf16.gmra.mxu0 %v1465
        %v2192 = vpop.f32.mrf.mxu0
        %v2193 = vadd.f32 0.0, %v2192
        %v2194 = vpop.f32.mrf.mxu0
        %v2195 = vpop.f32.mrf.mxu0
        %v2196 = vadd.f32 0.0, %v2195
        %v2197 = vpop.f32.mrf.mxu0
        %2198 = vmatprep.mubr.bf16.mxu0 0
        %2199 = vmatmul.mubr.bf16.gmra.mxu0 %v1468
        %v2200 = vpop.f32.mrf.mxu0
        %v2201 = vadd.f32 0.0, %v2200
        %v2202 = vpop.f32.mrf.mxu0
        %v2203 = vpop.f32.mrf.mxu0
        %v2204 = vadd.f32 0.0, %v2203
        %v2205 = vpop.f32.mrf.mxu0
        %2206 = vmatprep.mubr.bf16.mxu0 0
        %2207 = vmatmul.mubr.bf16.gmra.mxu0 %v1471
        %v2208 = vpop.f32.mrf.mxu0
        %v2209 = vadd.f32 0.0, %v2208
        %v2210 = vpop.f32.mrf.mxu0
        %v2211 = vpop.f32.mrf.mxu0
        %v2212 = vadd.f32 0.0, %v2211
        %v2213 = vpop.f32.mrf.mxu0
        %2214 = vmatprep.mubr.bf16.mxu0 0
        %2215 = vmatmul.mubr.bf16.gmra.mxu0 %v1474
        %v2216 = vpop.f32.mrf.mxu0
        %v2217 = vadd.f32 0.0, %v2216
        %v2218 = vpop.f32.mrf.mxu0
        %v2219 = vpop.f32.mrf.mxu0
        %v2220 = vadd.f32 0.0, %v2219
        %v2221 = vpop.f32.mrf.mxu0
        %2222 = vmatprep.mubr.bf16.mxu0 0
        %2223 = vmatmul.mubr.bf16.gmra.mxu0 %v1477
        %v2224 = vpop.f32.mrf.mxu0
        %v2225 = vadd.f32 0.0, %v2224
        %v2226 = vpop.f32.mrf.mxu0
        %v2227 = vpop.f32.mrf.mxu0
        %v2228 = vadd.f32 0.0, %v2227
        %v2229 = vpop.f32.mrf.mxu0
        %2230 = vmatprep.mubr.bf16.mxu0 0
        %2231 = vmatmul.mubr.bf16.gmra.mxu0 %v1480
        %v2232 = vpop.f32.mrf.mxu0
        %v2233 = vadd.f32 0.0, %v2232
        %v2234 = vpop.f32.mrf.mxu0
        %v2235 = vpop.f32.mrf.mxu0
        %v2236 = vadd.f32 0.0, %v2235
        %v2237 = vpop.f32.mrf.mxu0
        %2238 = vmatprep.mubr.bf16.mxu0 0
        %2239 = vmatmul.mubr.bf16.gmra.mxu0 %v1483
        %v2240 = vpop.f32.mrf.mxu0
        %v2241 = vadd.f32 0.0, %v2240
        %v2242 = vpop.f32.mrf.mxu0
        %v2243 = vpop.f32.mrf.mxu0
        %v2244 = vadd.f32 0.0, %v2243
        %v2245 = vpop.f32.mrf.mxu0
        %2246 = vmatprep.mubr.bf16.mxu0 0
        %2247 = vmatmul.mubr.bf16.gmra.mxu0 %v1486
        %v2248 = vpop.f32.mrf.mxu0
        %v2249 = vadd.f32 0.0, %v2248
        %v2250 = vpop.f32.mrf.mxu0
        %v2251 = vpop.f32.mrf.mxu0
        %v2252 = vadd.f32 0.0, %v2251
        %v2253 = vpop.f32.mrf.mxu0
        %2254 = vmatprep.mubr.bf16.mxu0 0
        %2255 = vmatmul.mubr.bf16.gmra.mxu0 %v1489
        %v2256 = vpop.f32.mrf.mxu0
        %v2257 = vadd.f32 0.0, %v2256
        %v2258 = vpop.f32.mrf.mxu0
        %v2259 = vpop.f32.mrf.mxu0
        %v2260 = vadd.f32 0.0, %v2259
        %v2261 = vpop.f32.mrf.mxu0
        %2262 = vmatprep.mubr.bf16.mxu0 0
        %2263 = vmatmul.mubr.bf16.gmra.mxu0 %v1492
        %v2264 = vpop.f32.mrf.mxu0
        %v2265 = vadd.f32 0.0, %v2264
        %v2266 = vpop.f32.mrf.mxu0
        %v2267 = vpop.f32.mrf.mxu0
        %v2268 = vadd.f32 0.0, %v2267
        %v2269 = vpop.f32.mrf.mxu0
        %2270 = vmatprep.mubr.bf16.mxu0 0
        %2271 = vmatmul.mubr.bf16.gmra.mxu0 %v1495
        %v2272 = vpop.f32.mrf.mxu0
        %v2273 = vadd.f32 0.0, %v2272
        %v2274 = vpop.f32.mrf.mxu0
        %v2275 = vpop.f32.mrf.mxu0
        %v2276 = vadd.f32 0.0, %v2275
        %v2277 = vpop.f32.mrf.mxu0
        %2278 = vmatprep.mubr.bf16.mxu0 0
        %2279 = vmatmul.mubr.bf16.gmra.mxu0 %v1498
        %v2280 = vpop.f32.mrf.mxu0
        %v2281 = vadd.f32 0.0, %v2280
        %v2282 = vpop.f32.mrf.mxu0
        %v2283 = vpop.f32.mrf.mxu0
        %v2284 = vadd.f32 0.0, %v2283
        %v2285 = vpop.f32.mrf.mxu0
        %2286 = vmatprep.mubr.bf16.mxu0 0
        %2287 = vmatmul.mubr.bf16.gmra.mxu0 %v1501
        %v2288 = vpop.f32.mrf.mxu0
        %v2289 = vadd.f32 0.0, %v2288
        %v2290 = vpop.f32.mrf.mxu0
        %v2291 = vpop.f32.mrf.mxu0
        %v2292 = vadd.f32 0.0, %v2291
        %v2293 = vpop.f32.mrf.mxu0
        %2294 = vmatprep.mubr.bf16.mxu0 0
        %2295 = vmatmul.mubr.bf16.gmra.mxu0 %v1504
        %v2296 = vpop.f32.mrf.mxu0
        %v2297 = vadd.f32 0.0, %v2296
        %v2298 = vpop.f32.mrf.mxu0
        %v2299 = vpop.f32.mrf.mxu0
        %v2300 = vadd.f32 0.0, %v2299
        %v2301 = vpop.f32.mrf.mxu0
        %2302 = vmatprep.mubr.bf16.mxu0 0
        %2303 = vmatmul.mubr.bf16.gmra.mxu0 %v1507
        %v2304 = vpop.f32.mrf.mxu0
        %v2305 = vadd.f32 0.0, %v2304
        %v2306 = vpop.f32.mrf.mxu0
        %v2307 = vpop.f32.mrf.mxu0
        %v2308 = vadd.f32 0.0, %v2307
        %v2309 = vpop.f32.mrf.mxu0
        %2310 = vmatprep.mubr.bf16.mxu0 0
        %2311 = vmatmul.mubr.bf16.gmra.mxu0 %v2153
        %v2312 = vpop.f32.mrf.mxu0
        %v2313 = vadd.f32 0.0, %v2312
        %v2314 = vpop.f32.mrf.mxu0
        %v2315 = vpop.f32.mrf.mxu0
        %v2316 = vadd.f32 0.0, %v2315
        %v2317 = vpop.f32.mrf.mxu0
        %2318 = vdwg.mxu0
        %v2319 = vadd.f32 %v2107, %v2193
        %v2320 = vadd.f32 %v2108, %v2196
        %v2321 = vadd.f32 %v2109, %v2201
        %v2322 = vadd.f32 %v2110, %v2204
        %v2323 = vadd.f32 %v2111, %v2209
        %v2324 = vadd.f32 %v2112, %v2212
        %v2325 = vadd.f32 %v2113, %v2217
        %v2326 = vadd.f32 %v2114, %v2220
        %v2327 = vadd.f32 %v2115, %v2225
        %v2328 = vadd.f32 %v2116, %v2228
        %v2329 = vadd.f32 %v2117, %v2233
        %v2330 = vadd.f32 %v2118, %v2236
        %v2331 = vadd.f32 %v2119, %v2241
        %v2332 = vadd.f32 %v2120, %v2244
        %v2333 = vadd.f32 %v2121, %v2249
        %v2334 = vadd.f32 %v2122, %v2252
        %v2335 = vadd.f32 %v2123, %v2257
        %v2336 = vadd.f32 %v2124, %v2260
        %v2337 = vadd.f32 %v2125, %v2265
        %v2338 = vadd.f32 %v2126, %v2268
        %v2339 = vadd.f32 %v2127, %v2273
        %v2340 = vadd.f32 %v2128, %v2276
        %v2341 = vadd.f32 %v2129, %v2281
        %v2342 = vadd.f32 %v2130, %v2284
        %v2343 = vadd.f32 %v2131, %v2289
        %v2344 = vadd.f32 %v2132, %v2292
        %v2345 = vadd.f32 %v2133, %v2297
        %v2346 = vadd.f32 %v2134, %v2300
        %v2347 = vadd.f32 %v2135, %v2305
        %v2348 = vadd.f32 %v2136, %v2308
        %v2349 = vadd.f32 %v2137, %v2313
        %v2350 = vadd.f32 %v2138, %v2316
        %s2351 = scalar_lea.vmem %s2, 12
        %v2352 = vld [vmem:[%s2351] sm:$0x3]
        %v2355 = vunpack.c.l.b16 %v333
        %v2356 = vunpack.c.l.b16 %v334
        %v2357 = vpack.c.b16 %v2356, %v2355
        %v2359 = vsel %vm774, %v2357, 0
        %v2362 = vsel %vm823, %v2352, 0
        %2364 = vmatprep.subr.bf16.mxu0 0
        %2365 = vmatpush1.bf16.msra.mxu0 0
        %2366 = vmatprep.subr.bf16.mxu0 0
        %2367 = vmatpush1.bf16.msra.mxu0 0
        %2368 = vmatprep.subr.bf16.mxu0 0
        %2369 = vmatpush1.bf16.msra.mxu0 0
        %2370 = vmatprep.subr.bf16.mxu0 0
        %2371 = vmatpush1.bf16.msra.mxu0 0
        %2372 = vmatprep.subr.bf16.mxu0 0
        %2373 = vmatpush1.bf16.msra.mxu0 0
        %2374 = vmatprep.subr.bf16.mxu0 0
        %2375 = vmatpush1.bf16.msra.mxu0 0
        %2376 = vmatprep.subr.bf16.mxu0 0
        %2377 = vmatpush1.bf16.msra.mxu0 0
        %2378 = vmatprep.subr.bf16.mxu0 0
        %2379 = vmatpush1.bf16.msra.mxu0 %v2362
        %2380 = vmatprep.subr.bf16.mxu0 0
        %2381 = vmatpush2.bf16.msra.mxu0 0
        %2382 = vmatprep.subr.bf16.mxu0 0
        %2383 = vmatpush2.bf16.msra.mxu0 0
        %2384 = vmatprep.subr.bf16.mxu0 0
        %2385 = vmatpush2.bf16.msra.mxu0 0
        %2386 = vmatprep.subr.bf16.mxu0 0
        %2387 = vmatpush2.bf16.msra.mxu0 0
        %2388 = vmatprep.subr.bf16.mxu0 0
        %2389 = vmatpush2.bf16.msra.mxu0 0
        %2390 = vmatprep.subr.bf16.mxu0 0
        %2391 = vmatpush2.bf16.msra.mxu0 0
        %2392 = vmatprep.subr.bf16.mxu0 0
        %2393 = vmatpush2.bf16.msra.mxu0 0
        %2394 = vmatprep.subr.bf16.mxu0 0
        %2395 = vmatpush2.bf16.msra.mxu0 0
        %2396 = vmatprep.mubr.bf16.mxu0 0
        %2397 = vmatmul.mubr.bf16.gmra.mxu0 %v1075
        %v2398 = vpop.f32.mrf.mxu0
        %v2399 = vadd.f32 0.0, %v2398
        %v2400 = vpop.f32.mrf.mxu0
        %v2401 = vpop.f32.mrf.mxu0
        %v2402 = vadd.f32 0.0, %v2401
        %v2403 = vpop.f32.mrf.mxu0
        %2404 = vmatprep.mubr.bf16.mxu0 0
        %2405 = vmatmul.mubr.bf16.gmra.mxu0 %v1078
        %v2406 = vpop.f32.mrf.mxu0
        %v2407 = vadd.f32 0.0, %v2406
        %v2408 = vpop.f32.mrf.mxu0
        %v2409 = vpop.f32.mrf.mxu0
        %v2410 = vadd.f32 0.0, %v2409
        %v2411 = vpop.f32.mrf.mxu0
        %2412 = vmatprep.mubr.bf16.mxu0 0
        %2413 = vmatmul.mubr.bf16.gmra.mxu0 %v1081
        %v2414 = vpop.f32.mrf.mxu0
        %v2415 = vadd.f32 0.0, %v2414
        %v2416 = vpop.f32.mrf.mxu0
        %v2417 = vpop.f32.mrf.mxu0
        %v2418 = vadd.f32 0.0, %v2417
        %v2419 = vpop.f32.mrf.mxu0
        %2420 = vmatprep.mubr.bf16.mxu0 0
        %2421 = vmatmul.mubr.bf16.gmra.mxu0 %v1084
        %v2422 = vpop.f32.mrf.mxu0
        %v2423 = vadd.f32 0.0, %v2422
        %v2424 = vpop.f32.mrf.mxu0
        %v2425 = vpop.f32.mrf.mxu0
        %v2426 = vadd.f32 0.0, %v2425
        %v2427 = vpop.f32.mrf.mxu0
        %2428 = vmatprep.mubr.bf16.mxu0 0
        %2429 = vmatmul.mubr.bf16.gmra.mxu0 %v1087
        %v2430 = vpop.f32.mrf.mxu0
        %v2431 = vadd.f32 0.0, %v2430
        %v2432 = vpop.f32.mrf.mxu0
        %v2433 = vpop.f32.mrf.mxu0
        %v2434 = vadd.f32 0.0, %v2433
        %v2435 = vpop.f32.mrf.mxu0
        %2436 = vmatprep.mubr.bf16.mxu0 0
        %2437 = vmatmul.mubr.bf16.gmra.mxu0 %v1090
        %v2438 = vpop.f32.mrf.mxu0
        %v2439 = vadd.f32 0.0, %v2438
        %v2440 = vpop.f32.mrf.mxu0
        %v2441 = vpop.f32.mrf.mxu0
        %v2442 = vadd.f32 0.0, %v2441
        %v2443 = vpop.f32.mrf.mxu0
        %2444 = vmatprep.mubr.bf16.mxu0 0
        %2445 = vmatmul.mubr.bf16.gmra.mxu0 %v1093
        %v2446 = vpop.f32.mrf.mxu0
        %v2447 = vadd.f32 0.0, %v2446
        %v2448 = vpop.f32.mrf.mxu0
        %v2449 = vpop.f32.mrf.mxu0
        %v2450 = vadd.f32 0.0, %v2449
        %v2451 = vpop.f32.mrf.mxu0
        %2452 = vmatprep.mubr.bf16.mxu0 0
        %2453 = vmatmul.mubr.bf16.gmra.mxu0 %v1096
        %v2454 = vpop.f32.mrf.mxu0
        %v2455 = vadd.f32 0.0, %v2454
        %v2456 = vpop.f32.mrf.mxu0
        %v2457 = vpop.f32.mrf.mxu0
        %v2458 = vadd.f32 0.0, %v2457
        %v2459 = vpop.f32.mrf.mxu0
        %2460 = vmatprep.mubr.bf16.mxu0 0
        %2461 = vmatmul.mubr.bf16.gmra.mxu0 %v1099
        %v2462 = vpop.f32.mrf.mxu0
        %v2463 = vadd.f32 0.0, %v2462
        %v2464 = vpop.f32.mrf.mxu0
        %v2465 = vpop.f32.mrf.mxu0
        %v2466 = vadd.f32 0.0, %v2465
        %v2467 = vpop.f32.mrf.mxu0
        %2468 = vmatprep.mubr.bf16.mxu0 0
        %2469 = vmatmul.mubr.bf16.gmra.mxu0 %v1102
        %v2470 = vpop.f32.mrf.mxu0
        %v2471 = vadd.f32 0.0, %v2470
        %v2472 = vpop.f32.mrf.mxu0
        %v2473 = vpop.f32.mrf.mxu0
        %v2474 = vadd.f32 0.0, %v2473
        %v2475 = vpop.f32.mrf.mxu0
        %2476 = vmatprep.mubr.bf16.mxu0 0
        %2477 = vmatmul.mubr.bf16.gmra.mxu0 %v1105
        %v2478 = vpop.f32.mrf.mxu0
        %v2479 = vadd.f32 0.0, %v2478
        %v2480 = vpop.f32.mrf.mxu0
        %v2481 = vpop.f32.mrf.mxu0
        %v2482 = vadd.f32 0.0, %v2481
        %v2483 = vpop.f32.mrf.mxu0
        %2484 = vmatprep.mubr.bf16.mxu0 0
        %2485 = vmatmul.mubr.bf16.gmra.mxu0 %v1108
        %v2486 = vpop.f32.mrf.mxu0
        %v2487 = vadd.f32 0.0, %v2486
        %v2488 = vpop.f32.mrf.mxu0
        %v2489 = vpop.f32.mrf.mxu0
        %v2490 = vadd.f32 0.0, %v2489
        %v2491 = vpop.f32.mrf.mxu0
        %2492 = vmatprep.mubr.bf16.mxu0 0
        %2493 = vmatmul.mubr.bf16.gmra.mxu0 %v1111
        %v2494 = vpop.f32.mrf.mxu0
        %v2495 = vadd.f32 0.0, %v2494
        %v2496 = vpop.f32.mrf.mxu0
        %v2497 = vpop.f32.mrf.mxu0
        %v2498 = vadd.f32 0.0, %v2497
        %v2499 = vpop.f32.mrf.mxu0
        %2500 = vmatprep.mubr.bf16.mxu0 0
        %2501 = vmatmul.mubr.bf16.gmra.mxu0 %v1114
        %v2502 = vpop.f32.mrf.mxu0
        %v2503 = vadd.f32 0.0, %v2502
        %v2504 = vpop.f32.mrf.mxu0
        %v2505 = vpop.f32.mrf.mxu0
        %v2506 = vadd.f32 0.0, %v2505
        %v2507 = vpop.f32.mrf.mxu0
        %2508 = vmatprep.mubr.bf16.mxu0 0
        %2509 = vmatmul.mubr.bf16.gmra.mxu0 %v1713
        %v2510 = vpop.f32.mrf.mxu0
        %v2511 = vadd.f32 0.0, %v2510
        %v2512 = vpop.f32.mrf.mxu0
        %v2513 = vpop.f32.mrf.mxu0
        %v2514 = vadd.f32 0.0, %v2513
        %v2515 = vpop.f32.mrf.mxu0
        %2516 = vmatprep.mubr.bf16.mxu0 0
        %2517 = vmatmul.mubr.bf16.gmra.mxu0 %v2359
        %v2518 = vpop.f32.mrf.mxu0
        %v2519 = vadd.f32 0.0, %v2518
        %v2520 = vpop.f32.mrf.mxu0
        %v2521 = vpop.f32.mrf.mxu0
        %v2522 = vadd.f32 0.0, %v2521
        %v2523 = vpop.f32.mrf.mxu0
        %2524 = vdwg.mxu0
        %v2525 = vadd.f32 %v2319, %v2399
        %v2526 = vadd.f32 %v2320, %v2402
        %v2527 = vadd.f32 %v2321, %v2407
        %v2528 = vadd.f32 %v2322, %v2410
        %v2529 = vadd.f32 %v2323, %v2415
        %v2530 = vadd.f32 %v2324, %v2418
        %v2531 = vadd.f32 %v2325, %v2423
        %v2532 = vadd.f32 %v2326, %v2426
        %v2533 = vadd.f32 %v2327, %v2431
        %v2534 = vadd.f32 %v2328, %v2434
        %v2535 = vadd.f32 %v2329, %v2439
        %v2536 = vadd.f32 %v2330, %v2442
        %v2537 = vadd.f32 %v2331, %v2447
        %v2538 = vadd.f32 %v2332, %v2450
        %v2539 = vadd.f32 %v2333, %v2455
        %v2540 = vadd.f32 %v2334, %v2458
        %v2541 = vadd.f32 %v2335, %v2463
        %v2542 = vadd.f32 %v2336, %v2466
        %v2543 = vadd.f32 %v2337, %v2471
        %v2544 = vadd.f32 %v2338, %v2474
        %v2545 = vadd.f32 %v2339, %v2479
        %v2546 = vadd.f32 %v2340, %v2482
        %v2547 = vadd.f32 %v2341, %v2487
        %v2548 = vadd.f32 %v2342, %v2490
        %v2549 = vadd.f32 %v2343, %v2495
        %v2550 = vadd.f32 %v2344, %v2498
        %v2551 = vadd.f32 %v2345, %v2503
        %v2552 = vadd.f32 %v2346, %v2506
        %v2553 = vadd.f32 %v2347, %v2511
        %v2554 = vadd.f32 %v2348, %v2514
        %v2555 = vadd.f32 %v2349, %v2519
        %v2556 = vadd.f32 %v2350, %v2522
        %v2558 = vshrl.u32 %v333, 16
        %v2560 = vrot.slane %v2558, 4
        %v2561 = vshll.u32 %v333, 16
        %v2563 = vrot.slane %v2561, 5
        %v2564 = vor.u32 %v2560, %v2563
        %v2565 = vrot.slane %v2564, 4
        %v2567 = vshll.u32 %v334, 16
        %v2569 = vrot.slane %v2567, 5
        %v2570 = vsel %vm339, %v2565, %v2569
        %v2571 = vshrl.u32 %v334, 16
        %v2573 = vrot.slane %v2571, 4
        %v2574 = vor.u32 %v2573, %v2569
        %v2575 = vrot.slane %v2574, 4
        %v2577 = vshll.u32 %v335, 16
        %v2579 = vrot.slane %v2577, 5
        %v2580 = vsel %vm339, %v2575, %v2579
        %s2581 = scalar_lea.vmem %s2, 14
        %v2582 = vld [vmem:[%s2581] sm:$0x3]
        %v2583 = vunpack.c.l.b16 %v2570
        %v2584 = vunpack.c.l.b16 %v2580
        %v2585 = vpack.c.b16 %v2584, %v2583
        %v2587 = vsel %vm774, %v2585, 0
        %v2590 = vsel %vm823, %v2582, 0
        %2592 = vmatprep.subr.bf16.mxu0 0
        %2593 = vmatpush1.bf16.msra.mxu0 0
        %2594 = vmatprep.subr.bf16.mxu0 0
        %2595 = vmatpush1.bf16.msra.mxu0 0
        %2596 = vmatprep.subr.bf16.mxu0 0
        %2597 = vmatpush1.bf16.msra.mxu0 0
        %2598 = vmatprep.subr.bf16.mxu0 0
        %2599 = vmatpush1.bf16.msra.mxu0 0
        %2600 = vmatprep.subr.bf16.mxu0 0
        %2601 = vmatpush1.bf16.msra.mxu0 0
        %2602 = vmatprep.subr.bf16.mxu0 0
        %2603 = vmatpush1.bf16.msra.mxu0 0
        %2604 = vmatprep.subr.bf16.mxu0 0
        %2605 = vmatpush1.bf16.msra.mxu0 0
        %2606 = vmatprep.subr.bf16.mxu0 0
        %2607 = vmatpush1.bf16.msra.mxu0 %v2590
        %2608 = vmatprep.subr.bf16.mxu0 0
        %2609 = vmatpush2.bf16.msra.mxu0 0
        %2610 = vmatprep.subr.bf16.mxu0 0
        %2611 = vmatpush2.bf16.msra.mxu0 0
        %2612 = vmatprep.subr.bf16.mxu0 0
        %2613 = vmatpush2.bf16.msra.mxu0 0
        %2614 = vmatprep.subr.bf16.mxu0 0
        %2615 = vmatpush2.bf16.msra.mxu0 0
        %2616 = vmatprep.subr.bf16.mxu0 0
        %2617 = vmatpush2.bf16.msra.mxu0 0
        %2618 = vmatprep.subr.bf16.mxu0 0
        %2619 = vmatpush2.bf16.msra.mxu0 0
        %2620 = vmatprep.subr.bf16.mxu0 0
        %2621 = vmatpush2.bf16.msra.mxu0 0
        %2622 = vmatprep.subr.bf16.mxu0 0
        %2623 = vmatpush2.bf16.msra.mxu0 0
        %2624 = vmatprep.mubr.bf16.mxu0 0
        %2625 = vmatmul.mubr.bf16.gmra.mxu0 %v782
        %v2626 = vpop.f32.mrf.mxu0
        %v2627 = vadd.f32 0.0, %v2626
        %v2628 = vpop.f32.mrf.mxu0
        %v2629 = vpop.f32.mrf.mxu0
        %v2630 = vadd.f32 0.0, %v2629
        %v2631 = vpop.f32.mrf.mxu0
        %2632 = vmatprep.mubr.bf16.mxu0 0
        %2633 = vmatmul.mubr.bf16.gmra.mxu0 %v785
        %v2634 = vpop.f32.mrf.mxu0
        %v2635 = vadd.f32 0.0, %v2634
        %v2636 = vpop.f32.mrf.mxu0
        %v2637 = vpop.f32.mrf.mxu0
        %v2638 = vadd.f32 0.0, %v2637
        %v2639 = vpop.f32.mrf.mxu0
        %2640 = vmatprep.mubr.bf16.mxu0 0
        %2641 = vmatmul.mubr.bf16.gmra.mxu0 %v788
        %v2642 = vpop.f32.mrf.mxu0
        %v2643 = vadd.f32 0.0, %v2642
        %v2644 = vpop.f32.mrf.mxu0
        %v2645 = vpop.f32.mrf.mxu0
        %v2646 = vadd.f32 0.0, %v2645
        %v2647 = vpop.f32.mrf.mxu0
        %2648 = vmatprep.mubr.bf16.mxu0 0
        %2649 = vmatmul.mubr.bf16.gmra.mxu0 %v791
        %v2650 = vpop.f32.mrf.mxu0
        %v2651 = vadd.f32 0.0, %v2650
        %v2652 = vpop.f32.mrf.mxu0
        %v2653 = vpop.f32.mrf.mxu0
        %v2654 = vadd.f32 0.0, %v2653
        %v2655 = vpop.f32.mrf.mxu0
        %2656 = vmatprep.mubr.bf16.mxu0 0
        %2657 = vmatmul.mubr.bf16.gmra.mxu0 %v794
        %v2658 = vpop.f32.mrf.mxu0
        %v2659 = vadd.f32 0.0, %v2658
        %v2660 = vpop.f32.mrf.mxu0
        %v2661 = vpop.f32.mrf.mxu0
        %v2662 = vadd.f32 0.0, %v2661
        %v2663 = vpop.f32.mrf.mxu0
        %2664 = vmatprep.mubr.bf16.mxu0 0
        %2665 = vmatmul.mubr.bf16.gmra.mxu0 %v797
        %v2666 = vpop.f32.mrf.mxu0
        %v2667 = vadd.f32 0.0, %v2666
        %v2668 = vpop.f32.mrf.mxu0
        %v2669 = vpop.f32.mrf.mxu0
        %v2670 = vadd.f32 0.0, %v2669
        %v2671 = vpop.f32.mrf.mxu0
        %2672 = vmatprep.mubr.bf16.mxu0 0
        %2673 = vmatmul.mubr.bf16.gmra.mxu0 %v800
        %v2674 = vpop.f32.mrf.mxu0
        %v2675 = vadd.f32 0.0, %v2674
        %v2676 = vpop.f32.mrf.mxu0
        %v2677 = vpop.f32.mrf.mxu0
        %v2678 = vadd.f32 0.0, %v2677
        %v2679 = vpop.f32.mrf.mxu0
        %2680 = vmatprep.mubr.bf16.mxu0 0
        %2681 = vmatmul.mubr.bf16.gmra.mxu0 %v803
        %v2682 = vpop.f32.mrf.mxu0
        %v2683 = vadd.f32 0.0, %v2682
        %v2684 = vpop.f32.mrf.mxu0
        %v2685 = vpop.f32.mrf.mxu0
        %v2686 = vadd.f32 0.0, %v2685
        %v2687 = vpop.f32.mrf.mxu0
        %2688 = vmatprep.mubr.bf16.mxu0 0
        %2689 = vmatmul.mubr.bf16.gmra.mxu0 %v806
        %v2690 = vpop.f32.mrf.mxu0
        %v2691 = vadd.f32 0.0, %v2690
        %v2692 = vpop.f32.mrf.mxu0
        %v2693 = vpop.f32.mrf.mxu0
        %v2694 = vadd.f32 0.0, %v2693
        %v2695 = vpop.f32.mrf.mxu0
        %2696 = vmatprep.mubr.bf16.mxu0 0
        %2697 = vmatmul.mubr.bf16.gmra.mxu0 %v809
        %v2698 = vpop.f32.mrf.mxu0
        %v2699 = vadd.f32 0.0, %v2698
        %v2700 = vpop.f32.mrf.mxu0
        %v2701 = vpop.f32.mrf.mxu0
        %v2702 = vadd.f32 0.0, %v2701
        %v2703 = vpop.f32.mrf.mxu0
        %2704 = vmatprep.mubr.bf16.mxu0 0
        %2705 = vmatmul.mubr.bf16.gmra.mxu0 %v812
        %v2706 = vpop.f32.mrf.mxu0
        %v2707 = vadd.f32 0.0, %v2706
        %v2708 = vpop.f32.mrf.mxu0
        %v2709 = vpop.f32.mrf.mxu0
        %v2710 = vadd.f32 0.0, %v2709
        %v2711 = vpop.f32.mrf.mxu0
        %2712 = vmatprep.mubr.bf16.mxu0 0
        %2713 = vmatmul.mubr.bf16.gmra.mxu0 %v815
        %v2714 = vpop.f32.mrf.mxu0
        %v2715 = vadd.f32 0.0, %v2714
        %v2716 = vpop.f32.mrf.mxu0
        %v2717 = vpop.f32.mrf.mxu0
        %v2718 = vadd.f32 0.0, %v2717
        %v2719 = vpop.f32.mrf.mxu0
        %2720 = vmatprep.mubr.bf16.mxu0 0
        %2721 = vmatmul.mubr.bf16.gmra.mxu0 %v818
        %v2722 = vpop.f32.mrf.mxu0
        %v2723 = vadd.f32 0.0, %v2722
        %v2724 = vpop.f32.mrf.mxu0
        %v2725 = vpop.f32.mrf.mxu0
        %v2726 = vadd.f32 0.0, %v2725
        %v2727 = vpop.f32.mrf.mxu0
        %2728 = vmatprep.mubr.bf16.mxu0 0
        %2729 = vmatmul.mubr.bf16.gmra.mxu0 %v821
        %v2730 = vpop.f32.mrf.mxu0
        %v2731 = vadd.f32 0.0, %v2730
        %v2732 = vpop.f32.mrf.mxu0
        %v2733 = vpop.f32.mrf.mxu0
        %v2734 = vadd.f32 0.0, %v2733
        %v2735 = vpop.f32.mrf.mxu0
        %2736 = vmatprep.mubr.bf16.mxu0 0
        %2737 = vmatmul.mubr.bf16.gmra.mxu0 %v1941
        %v2738 = vpop.f32.mrf.mxu0
        %v2739 = vadd.f32 0.0, %v2738
        %v2740 = vpop.f32.mrf.mxu0
        %v2741 = vpop.f32.mrf.mxu0
        %v2742 = vadd.f32 0.0, %v2741
        %v2743 = vpop.f32.mrf.mxu0
        %2744 = vmatprep.mubr.bf16.mxu0 0
        %2745 = vmatmul.mubr.bf16.gmra.mxu0 %v2587
        %v2746 = vpop.f32.mrf.mxu0
        %v2747 = vadd.f32 0.0, %v2746
        %v2748 = vpop.f32.mrf.mxu0
        %v2749 = vpop.f32.mrf.mxu0
        %v2750 = vadd.f32 0.0, %v2749
        %v2751 = vpop.f32.mrf.mxu0
        %2752 = vdwg.mxu0
        %v2753 = vadd.f32 %v2525, %v2627
        %v2754 = vadd.f32 %v2526, %v2630
        %v2755 = vadd.f32 %v2527, %v2635
        %v2756 = vadd.f32 %v2528, %v2638
        %v2757 = vadd.f32 %v2529, %v2643
        %v2758 = vadd.f32 %v2530, %v2646
        %v2759 = vadd.f32 %v2531, %v2651
        %v2760 = vadd.f32 %v2532, %v2654
        %v2761 = vadd.f32 %v2533, %v2659
        %v2762 = vadd.f32 %v2534, %v2662
        %v2763 = vadd.f32 %v2535, %v2667
        %v2764 = vadd.f32 %v2536, %v2670
        %v2765 = vadd.f32 %v2537, %v2675
        %v2766 = vadd.f32 %v2538, %v2678
        %v2767 = vadd.f32 %v2539, %v2683
        %v2768 = vadd.f32 %v2540, %v2686
        %v2769 = vadd.f32 %v2541, %v2691
        %v2770 = vadd.f32 %v2542, %v2694
        %v2771 = vadd.f32 %v2543, %v2699
        %v2772 = vadd.f32 %v2544, %v2702
        %v2773 = vadd.f32 %v2545, %v2707
        %v2774 = vadd.f32 %v2546, %v2710
        %v2775 = vadd.f32 %v2547, %v2715
        %v2776 = vadd.f32 %v2548, %v2718
        %v2777 = vadd.f32 %v2549, %v2723
        %v2778 = vadd.f32 %v2550, %v2726
        %v2779 = vadd.f32 %v2551, %v2731
        %v2780 = vadd.f32 %v2552, %v2734
        %v2781 = vadd.f32 %v2553, %v2739
        %v2782 = vadd.f32 %v2554, %v2742
        %v2783 = vadd.f32 %v2555, %v2747
        %v2784 = vadd.f32 %v2556, %v2750
        %v2786 = vrot.slane %v333, 5
        %v2787 = vrot.slane %v2786, 4
        %v2788 = vrot.slane %v334, 5
        %v2789 = vsel %vm1298, %v2787, %v2788
        %v2790 = vrot.slane %v2788, 4
        %v2791 = vrot.slane %v335, 5
        %v2792 = vsel %vm1298, %v2790, %v2791
        %s2793 = scalar_lea.vmem %s2, 16
        %v2794 = vld [vmem:[%s2793] sm:$0x3]
        %v2795 = vunpack.c.l.b16 %v2789
        %v2796 = vunpack.c.l.b16 %v2792
        %v2797 = vpack.c.b16 %v2796, %v2795
        %v2799 = vsel %vm774, %v2797, 0
        %v2802 = vsel %vm823, %v2794, 0
        %2804 = vmatprep.subr.bf16.mxu0 0
        %2805 = vmatpush1.bf16.msra.mxu0 0
        %2806 = vmatprep.subr.bf16.mxu0 0
        %2807 = vmatpush1.bf16.msra.mxu0 0
        %2808 = vmatprep.subr.bf16.mxu0 0
        %2809 = vmatpush1.bf16.msra.mxu0 0
        %2810 = vmatprep.subr.bf16.mxu0 0
        %2811 = vmatpush1.bf16.msra.mxu0 0
        %2812 = vmatprep.subr.bf16.mxu0 0
        %2813 = vmatpush1.bf16.msra.mxu0 0
        %2814 = vmatprep.subr.bf16.mxu0 0
        %2815 = vmatpush1.bf16.msra.mxu0 0
        %2816 = vmatprep.subr.bf16.mxu0 0
        %2817 = vmatpush1.bf16.msra.mxu0 0
        %2818 = vmatprep.subr.bf16.mxu0 0
        %2819 = vmatpush1.bf16.msra.mxu0 %v2802
        %2820 = vmatprep.subr.bf16.mxu0 0
        %2821 = vmatpush2.bf16.msra.mxu0 0
        %2822 = vmatprep.subr.bf16.mxu0 0
        %2823 = vmatpush2.bf16.msra.mxu0 0
        %2824 = vmatprep.subr.bf16.mxu0 0
        %2825 = vmatpush2.bf16.msra.mxu0 0
        %2826 = vmatprep.subr.bf16.mxu0 0
        %2827 = vmatpush2.bf16.msra.mxu0 0
        %2828 = vmatprep.subr.bf16.mxu0 0
        %2829 = vmatpush2.bf16.msra.mxu0 0
        %2830 = vmatprep.subr.bf16.mxu0 0
        %2831 = vmatpush2.bf16.msra.mxu0 0
        %2832 = vmatprep.subr.bf16.mxu0 0
        %2833 = vmatpush2.bf16.msra.mxu0 0
        %2834 = vmatprep.subr.bf16.mxu0 0
        %2835 = vmatpush2.bf16.msra.mxu0 0
        %2836 = vmatprep.mubr.bf16.mxu0 0
        %2837 = vmatmul.mubr.bf16.gmra.mxu0 %v1468
        %v2838 = vpop.f32.mrf.mxu0
        %v2839 = vadd.f32 0.0, %v2838
        %v2840 = vpop.f32.mrf.mxu0
        %v2841 = vpop.f32.mrf.mxu0
        %v2842 = vadd.f32 0.0, %v2841
        %v2843 = vpop.f32.mrf.mxu0
        %2844 = vmatprep.mubr.bf16.mxu0 0
        %2845 = vmatmul.mubr.bf16.gmra.mxu0 %v1471
        %v2846 = vpop.f32.mrf.mxu0
        %v2847 = vadd.f32 0.0, %v2846
        %v2848 = vpop.f32.mrf.mxu0
        %v2849 = vpop.f32.mrf.mxu0
        %v2850 = vadd.f32 0.0, %v2849
        %v2851 = vpop.f32.mrf.mxu0
        %2852 = vmatprep.mubr.bf16.mxu0 0
        %2853 = vmatmul.mubr.bf16.gmra.mxu0 %v1474
        %v2854 = vpop.f32.mrf.mxu0
        %v2855 = vadd.f32 0.0, %v2854
        %v2856 = vpop.f32.mrf.mxu0
        %v2857 = vpop.f32.mrf.mxu0
        %v2858 = vadd.f32 0.0, %v2857
        %v2859 = vpop.f32.mrf.mxu0
        %2860 = vmatprep.mubr.bf16.mxu0 0
        %2861 = vmatmul.mubr.bf16.gmra.mxu0 %v1477
        %v2862 = vpop.f32.mrf.mxu0
        %v2863 = vadd.f32 0.0, %v2862
        %v2864 = vpop.f32.mrf.mxu0
        %v2865 = vpop.f32.mrf.mxu0
        %v2866 = vadd.f32 0.0, %v2865
        %v2867 = vpop.f32.mrf.mxu0
        %2868 = vmatprep.mubr.bf16.mxu0 0
        %2869 = vmatmul.mubr.bf16.gmra.mxu0 %v1480
        %v2870 = vpop.f32.mrf.mxu0
        %v2871 = vadd.f32 0.0, %v2870
        %v2872 = vpop.f32.mrf.mxu0
        %v2873 = vpop.f32.mrf.mxu0
        %v2874 = vadd.f32 0.0, %v2873
        %v2875 = vpop.f32.mrf.mxu0
        %2876 = vmatprep.mubr.bf16.mxu0 0
        %2877 = vmatmul.mubr.bf16.gmra.mxu0 %v1483
        %v2878 = vpop.f32.mrf.mxu0
        %v2879 = vadd.f32 0.0, %v2878
        %v2880 = vpop.f32.mrf.mxu0
        %v2881 = vpop.f32.mrf.mxu0
        %v2882 = vadd.f32 0.0, %v2881
        %v2883 = vpop.f32.mrf.mxu0
        %2884 = vmatprep.mubr.bf16.mxu0 0
        %2885 = vmatmul.mubr.bf16.gmra.mxu0 %v1486
        %v2886 = vpop.f32.mrf.mxu0
        %v2887 = vadd.f32 0.0, %v2886
        %v2888 = vpop.f32.mrf.mxu0
        %v2889 = vpop.f32.mrf.mxu0
        %v2890 = vadd.f32 0.0, %v2889
        %v2891 = vpop.f32.mrf.mxu0
        %2892 = vmatprep.mubr.bf16.mxu0 0
        %2893 = vmatmul.mubr.bf16.gmra.mxu0 %v1489
        %v2894 = vpop.f32.mrf.mxu0
        %v2895 = vadd.f32 0.0, %v2894
        %v2896 = vpop.f32.mrf.mxu0
        %v2897 = vpop.f32.mrf.mxu0
        %v2898 = vadd.f32 0.0, %v2897
        %v2899 = vpop.f32.mrf.mxu0
        %2900 = vmatprep.mubr.bf16.mxu0 0
        %2901 = vmatmul.mubr.bf16.gmra.mxu0 %v1492
        %v2902 = vpop.f32.mrf.mxu0
        %v2903 = vadd.f32 0.0, %v2902
        %v2904 = vpop.f32.mrf.mxu0
        %v2905 = vpop.f32.mrf.mxu0
        %v2906 = vadd.f32 0.0, %v2905
        %v2907 = vpop.f32.mrf.mxu0
        %2908 = vmatprep.mubr.bf16.mxu0 0
        %2909 = vmatmul.mubr.bf16.gmra.mxu0 %v1495
        %v2910 = vpop.f32.mrf.mxu0
        %v2911 = vadd.f32 0.0, %v2910
        %v2912 = vpop.f32.mrf.mxu0
        %v2913 = vpop.f32.mrf.mxu0
        %v2914 = vadd.f32 0.0, %v2913
        %v2915 = vpop.f32.mrf.mxu0
        %2916 = vmatprep.mubr.bf16.mxu0 0
        %2917 = vmatmul.mubr.bf16.gmra.mxu0 %v1498
        %v2918 = vpop.f32.mrf.mxu0
        %v2919 = vadd.f32 0.0, %v2918
        %v2920 = vpop.f32.mrf.mxu0
        %v2921 = vpop.f32.mrf.mxu0
        %v2922 = vadd.f32 0.0, %v2921
        %v2923 = vpop.f32.mrf.mxu0
        %2924 = vmatprep.mubr.bf16.mxu0 0
        %2925 = vmatmul.mubr.bf16.gmra.mxu0 %v1501
        %v2926 = vpop.f32.mrf.mxu0
        %v2927 = vadd.f32 0.0, %v2926
        %v2928 = vpop.f32.mrf.mxu0
        %v2929 = vpop.f32.mrf.mxu0
        %v2930 = vadd.f32 0.0, %v2929
        %v2931 = vpop.f32.mrf.mxu0
        %2932 = vmatprep.mubr.bf16.mxu0 0
        %2933 = vmatmul.mubr.bf16.gmra.mxu0 %v1504
        %v2934 = vpop.f32.mrf.mxu0
        %v2935 = vadd.f32 0.0, %v2934
        %v2936 = vpop.f32.mrf.mxu0
        %v2937 = vpop.f32.mrf.mxu0
        %v2938 = vadd.f32 0.0, %v2937
        %v2939 = vpop.f32.mrf.mxu0
        %2940 = vmatprep.mubr.bf16.mxu0 0
        %2941 = vmatmul.mubr.bf16.gmra.mxu0 %v1507
        %v2942 = vpop.f32.mrf.mxu0
        %v2943 = vadd.f32 0.0, %v2942
        %v2944 = vpop.f32.mrf.mxu0
        %v2945 = vpop.f32.mrf.mxu0
        %v2946 = vadd.f32 0.0, %v2945
        %v2947 = vpop.f32.mrf.mxu0
        %2948 = vmatprep.mubr.bf16.mxu0 0
        %2949 = vmatmul.mubr.bf16.gmra.mxu0 %v2153
        %v2950 = vpop.f32.mrf.mxu0
        %v2951 = vadd.f32 0.0, %v2950
        %v2952 = vpop.f32.mrf.mxu0
        %v2953 = vpop.f32.mrf.mxu0
        %v2954 = vadd.f32 0.0, %v2953
        %v2955 = vpop.f32.mrf.mxu0
        %2956 = vmatprep.mubr.bf16.mxu0 0
        %2957 = vmatmul.mubr.bf16.gmra.mxu0 %v2799
        %v2958 = vpop.f32.mrf.mxu0
        %v2959 = vadd.f32 0.0, %v2958
        %v2960 = vpop.f32.mrf.mxu0
        %v2961 = vpop.f32.mrf.mxu0
        %v2962 = vadd.f32 0.0, %v2961
        %v2963 = vpop.f32.mrf.mxu0
        %2964 = vdwg.mxu0
        %v2965 = vadd.f32 %v2753, %v2839
        %v2966 = vadd.f32 %v2754, %v2842
        %v2967 = vadd.f32 %v2755, %v2847
        %v2968 = vadd.f32 %v2756, %v2850
        %v2969 = vadd.f32 %v2757, %v2855
        %v2970 = vadd.f32 %v2758, %v2858
        %v2971 = vadd.f32 %v2759, %v2863
        %v2972 = vadd.f32 %v2760, %v2866
        %v2973 = vadd.f32 %v2761, %v2871
        %v2974 = vadd.f32 %v2762, %v2874
        %v2975 = vadd.f32 %v2763, %v2879
        %v2976 = vadd.f32 %v2764, %v2882
        %v2977 = vadd.f32 %v2765, %v2887
        %v2978 = vadd.f32 %v2766, %v2890
        %v2979 = vadd.f32 %v2767, %v2895
        %v2980 = vadd.f32 %v2768, %v2898
        %v2981 = vadd.f32 %v2769, %v2903
        %v2982 = vadd.f32 %v2770, %v2906
        %v2983 = vadd.f32 %v2771, %v2911
        %v2984 = vadd.f32 %v2772, %v2914
        %v2985 = vadd.f32 %v2773, %v2919
        %v2986 = vadd.f32 %v2774, %v2922
        %v2987 = vadd.f32 %v2775, %v2927
        %v2988 = vadd.f32 %v2776, %v2930
        %v2989 = vadd.f32 %v2777, %v2935
        %v2990 = vadd.f32 %v2778, %v2938
        %v2991 = vadd.f32 %v2779, %v2943
        %v2992 = vadd.f32 %v2780, %v2946
        %v2993 = vadd.f32 %v2781, %v2951
        %v2994 = vadd.f32 %v2782, %v2954
        %v2995 = vadd.f32 %v2783, %v2959
        %v2996 = vadd.f32 %v2784, %v2962
        %v2997 = vpack.c.bf16 %v2966, %v2965
        %v2998 = vpack.c.bf16 %v2968, %v2967
        %v2999 = vpack.c.bf16 %v2970, %v2969
        %v3000 = vpack.c.bf16 %v2972, %v2971
        %v3001 = vpack.c.bf16 %v2974, %v2973
        %v3002 = vpack.c.bf16 %v2976, %v2975
        %v3003 = vpack.c.bf16 %v2978, %v2977
        %v3004 = vpack.c.bf16 %v2980, %v2979
        %v3005 = vpack.c.bf16 %v2982, %v2981
        %v3006 = vpack.c.bf16 %v2984, %v2983
        %v3007 = vpack.c.bf16 %v2986, %v2985
        %v3008 = vpack.c.bf16 %v2988, %v2987
        %v3009 = vpack.c.bf16 %v2990, %v2989
        %v3010 = vpack.c.bf16 %v2992, %v2991
        %v3011 = vpack.c.bf16 %v2994, %v2993
        %v3012 = vpack.c.bf16 %v2996, %v2995
        %v3029 = vunpack.c.l.b16 %v2997
        %v3030 = vunpack.c.h.b16 %v2997
        %v3031 = vunpack.c.l.b16 %v2998
        %v3032 = vunpack.c.h.b16 %v2998
        %v3033 = vunpack.c.l.b16 %v2999
        %v3034 = vunpack.c.h.b16 %v2999
        %v3035 = vunpack.c.l.b16 %v3000
        %v3036 = vunpack.c.h.b16 %v3000
        %v3037 = vunpack.c.l.b16 %v3001
        %v3038 = vunpack.c.h.b16 %v3001
        %v3039 = vunpack.c.l.b16 %v3002
        %v3040 = vunpack.c.h.b16 %v3002
        %v3041 = vunpack.c.l.b16 %v3003
        %v3042 = vunpack.c.h.b16 %v3003
        %v3043 = vunpack.c.l.b16 %v3004
        %v3044 = vunpack.c.h.b16 %v3004
        %v3045 = vunpack.c.l.b16 %v3005
        %v3046 = vunpack.c.h.b16 %v3005
        %v3047 = vunpack.c.l.b16 %v3006
        %v3048 = vunpack.c.h.b16 %v3006
        %v3049 = vunpack.c.l.b16 %v3007
        %v3050 = vunpack.c.h.b16 %v3007
        %v3051 = vunpack.c.l.b16 %v3008
        %v3052 = vunpack.c.h.b16 %v3008
        %v3053 = vunpack.c.l.b16 %v3009
        %v3054 = vunpack.c.h.b16 %v3009
        %v3055 = vunpack.c.l.b16 %v3010
        %v3056 = vunpack.c.h.b16 %v3010
        %v3057 = vunpack.c.l.b16 %v3011
        %v3058 = vunpack.c.h.b16 %v3011
        %v3059 = vunpack.c.l.b16 %v3012
        %v3060 = vunpack.c.h.b16 %v3012
        %v3061 = vpack.c.b16 %v3029, %v3029
        %v3062 = vpack.c.b16 %v3030, %v3030
        %v3063 = vpack.c.b16 %v3031, %v3031
        %v3064 = vpack.c.b16 %v3032, %v3032
        %v3065 = vpack.c.b16 %v3033, %v3033
        %v3066 = vpack.c.b16 %v3034, %v3034
        %v3067 = vpack.c.b16 %v3035, %v3035
        %v3068 = vpack.c.b16 %v3036, %v3036
        %v3069 = vpack.c.b16 %v3037, %v3037
        %v3070 = vpack.c.b16 %v3038, %v3038
        %v3071 = vpack.c.b16 %v3039, %v3039
        %v3072 = vpack.c.b16 %v3040, %v3040
        %v3073 = vpack.c.b16 %v3041, %v3041
        %v3074 = vpack.c.b16 %v3042, %v3042
        %v3075 = vpack.c.b16 %v3043, %v3043
        %v3076 = vpack.c.b16 %v3044, %v3044
        %v3077 = vpack.c.b16 %v3045, %v3045
        %v3078 = vpack.c.b16 %v3046, %v3046
        %v3079 = vpack.c.b16 %v3047, %v3047
        %v3080 = vpack.c.b16 %v3048, %v3048
        %v3081 = vpack.c.b16 %v3049, %v3049
        %v3082 = vpack.c.b16 %v3050, %v3050
        %v3083 = vpack.c.b16 %v3051, %v3051
        %v3084 = vpack.c.b16 %v3052, %v3052
        %v3085 = vpack.c.b16 %v3053, %v3053
        %v3086 = vpack.c.b16 %v3054, %v3054
        %v3087 = vpack.c.b16 %v3055, %v3055
        %v3088 = vpack.c.b16 %v3056, %v3056
        %v3089 = vpack.c.b16 %v3057, %v3057
        %v3090 = vpack.c.b16 %v3058, %v3058
        %v3091 = vpack.c.b16 %v3059, %v3059
        %v3092 = vpack.c.b16 %v3060, %v3060
        %3125 = vst [vmem:[%s243] sm:$0xf] %v3061
        %3126 = vst [vmem:[%s243 + $0x4] sm:$0xf] %v3062
        %3127 = vst [vmem:[%s243 + $0x8] sm:$0xf] %v3063
        %3128 = vst [vmem:[%s243 + $0xc] sm:$0xf] %v3064
        %3129 = vst [vmem:[%s243 + $0x10] sm:$0xf] %v3065
        %3130 = vst [vmem:[%s243 + $0x14] sm:$0xf] %v3066
        %3131 = vst [vmem:[%s243 + $0x18] sm:$0xf] %v3067
        %3132 = vst [vmem:[%s243 + $0x1c] sm:$0xf] %v3068
        %3133 = vst [vmem:[%s243 + $0x20] sm:$0xf] %v3069
        %3134 = vst [vmem:[%s243 + $0x24] sm:$0xf] %v3070
        %3135 = vst [vmem:[%s243 + $0x28] sm:$0xf] %v3071
        %3136 = vst [vmem:[%s243 + $0x2c] sm:$0xf] %v3072
        %3137 = vst [vmem:[%s243 + $0x30] sm:$0xf] %v3073
        %3138 = vst [vmem:[%s243 + $0x34] sm:$0xf] %v3074
        %3139 = vst [vmem:[%s243 + $0x38] sm:$0xf] %v3075
        %3140 = vst [vmem:[%s243 + $0x3c] sm:$0xf] %v3076
        %3141 = vst [vmem:[%s243 + $0x40] sm:$0xf] %v3077
        %3142 = vst [vmem:[%s243 + $0x44] sm:$0xf] %v3078
        %3143 = vst [vmem:[%s243 + $0x48] sm:$0xf] %v3079
        %3144 = vst [vmem:[%s243 + $0x4c] sm:$0xf] %v3080
        %3145 = vst [vmem:[%s243 + $0x50] sm:$0xf] %v3081
        %3146 = vst [vmem:[%s243 + $0x54] sm:$0xf] %v3082
        %3147 = vst [vmem:[%s243 + $0x58] sm:$0xf] %v3083
        %3148 = vst [vmem:[%s243 + $0x5c] sm:$0xf] %v3084
        %3149 = vst [vmem:[%s243 + $0x60] sm:$0xf] %v3085
        %3150 = vst [vmem:[%s243 + $0x64] sm:$0xf] %v3086
        %3151 = vst [vmem:[%s243 + $0x68] sm:$0xf] %v3087
        %3152 = vst [vmem:[%s243 + $0x6c] sm:$0xf] %v3088
        %3153 = vst [vmem:[%s243 + $0x70] sm:$0xf] %v3089
        %3154 = vst [vmem:[%s243 + $0x74] sm:$0xf] %v3090
        %3155 = vst [vmem:[%s243 + $0x78] sm:$0xf] %v3091
        %3156 = vst [vmem:[%s243 + $0x7c] sm:$0xf] %v3092
        %s3157 = sand.u32 %s120, 1
        %s3158 = scalar_lea.sflag [#allocation3], %s3157
        %s3159 = sand.u32 %s120, 1
        %s3160 = smul.addr %s3159, 128
        %s3161 = scalar_lea.vmem [#allocation2], %s3160
        // Predicated region
        $region33: #{tpu_custom_call.1} parent=31 // pred_check
          %p3162 = pneg %p130
        $region34: #{tpu_custom_call.1} parent=31 // pred_check_branch
          %3164 = sbr.rel (%p3162) target = $region36
        $region35: #{tpu_custom_call.1} parent=31 // pred_region
          %s3165 = smul.u32 16, %s22
          %s3167 = ssub.s32 2048, 2048
          %3168 = vsyncadd %s3158, %s3167
          %s3169 = smul.addr %s3165, 2
          %s3170 = smul.addr %s21, 32
          %s3171 = sadd.s32 %s3169, %s3170
          %s3172 = smul.addr %s3171, 64
          %s3173 = scalar_lea.hbm %s3, %s3172
          %s3174 = sshll.u32 %s3161, 4
          %s3175 = int_to_ptr.vmem [resolvable:$true] %s3174
          %3180 = dma.vmem_to_hbm [thread:$0]  %s3175, 2048, %s3173, %s3158, 64, 64, 4
        $region36: #{tpu_custom_call.1} parent=31 // pred_fallthru
          _
      $region32: #{tpu_custom_call.1} parent=5 // pred_fallthru
        _
      %p3181 = scmp.le.s32.totalorder 2, %s12
      // Predicated region
      $region37: #{tpu_custom_call.1} parent=5 // pred_check
        %p3182 = pneg %p3181
      $region38: #{tpu_custom_call.1} parent=5 // pred_check_branch
        %3184 = sbr.rel (%p3182) target = $region40
      $region39: #{tpu_custom_call.1} parent=5 // pred_region
        %s3185 = ssub.s32 %s12, 2
        // Predicated region
        $region41: #{tpu_custom_call.1} parent=39 // pred_check
          %p3186 = pneg %p136
        $region42: #{tpu_custom_call.1} parent=39 // pred_check_branch
          %3188 = sbr.rel (%p3186) target = $region44
        $region43: #{tpu_custom_call.1} parent=39 // pred_region
          %s3189 = sand.u32 %s121, 1
          %s3190 = scalar_lea.sflag [#allocation3], %s3189
          %s3191 = sand.u32 %s121, 1
          %s3192 = smul.addr %s3191, 128
          %s3193 = scalar_lea.vmem [#allocation2], %s3192
          %3194 = dma.done %s3190, 2048
        $region44: #{tpu_custom_call.1} parent=39 // pred_fallthru
          _
      $region40: #{tpu_custom_call.1} parent=5 // pred_fallthru
        _
    $region6: #{tpu_custom_call.1} parent=1 // loop_footer
      %s16 = sadd.s32 1, %s12
    $region7: #{tpu_custom_call.1} parent=1 // loop_footer_branch
      %11 = sbr.rel target = $region3
    $region8: #{tpu_custom_call.1} parent=1 // loop_exit
      _
    %3195 = vsyncpa [#allocation3], 1
    %s3196 = scalar_lea.sflag [#allocation3], 1
    %3197 = vsyncpa %s3196, 1

</llo_original>
